<compile_context>
chip_gen: v5e
topology: v5e:2x2
jax: 0.10.0
libtpu: 0.0.40
codegen_flags: <defaults>
</compile_context>

<pallas_src>
import numpy as np
import jax
import jax.numpy as jnp
from jax.experimental import pallas as pl
from jax.experimental.pallas import tpu as pltpu


def _round_up(x, m):
    return ((x + m - 1) // m) * m


def _pick_tile(n, cap=512):
    """Largest 128-multiple tile <= cap, shrunk (>=128) so the padded extent
    gets at least 2 tiles when possible (v7x megacore 'parallel' sharding)."""
    n128 = _round_up(n, 128)
    t = min(cap, n128)
    while t > 128 and _round_up(n, t) // t < 2:
        t -= 128
    return t, _round_up(n, t)


# ----------------------------------------------------------------------------
# Graph preprocessing (mirrors the python loops in the torch forward)
# ----------------------------------------------------------------------------
def build_sub2(graph_sub2, num_entity, num_type):
    left_specific, right_common = [], []
    adj = np.zeros((num_entity, num_type), dtype=np.float32)
    for left_spec, right_comm in graph_sub2.items():
        if left_spec not in left_specific:
            left_specific.append(left_spec)
        for v in right_comm:
            if v not in right_common:
                right_common.append(v)
            adj[left_specific.index(left_spec), right_common.index(v)] = 1.0
    return left_specific, right_common, adj


def build_sub3(graph_sub3, num_type, num_entity):
    left_common, right_specific = [], []
    adj = np.zeros((num_type, num_entity), dtype=np.float32)
    for left_comm, right_spec in graph_sub3.items():
        if left_comm not in left_common:
            left_common.append(left_comm)
        # TODO(synk): the original source iterates `right_specific` (always
        # empty, a bug that makes the whole sub3 branch a no-op/crash); we
        # implement the clearly intended semantics and iterate `right_spec`.
        for v in right_spec:
            if v not in right_specific:
                right_specific.append(v)
            adj[left_common.index(left_comm), right_specific.index(v)] = 1.0
    return left_common, right_specific, adj


# ----------------------------------------------------------------------------
# Pallas kernels (grid = (row_tiles, reduction_tiles), reduction axis last)
# ----------------------------------------------------------------------------
def _make_sub2_kernel(tk):
    def kernel(adj_ref, emb_left_ref, emb_common_ref, bias_ref,
               out_f32_ref, out_bf16_ref):
        # adj:        (tm, tk)       int8  sub2 adjacency, transposed (T x E)
        # emb_left:   (E_pad, D_pad) bf16  VMEM-resident matmul operand
        # emb_common: (tm, D_pad)    f32   type embeddings (residual)
        # bias:       (tm, 1)        f32   num_entity - deg (the "ones" rows)
        k = pl.program_id(1)

        @pl.when(k == 0)
        def _():
            out_f32_ref[...] = jnp.zeros_like(out_f32_ref)

        a = adj_ref[...].astype(jnp.float32).astype(jnp.bfloat16)
        off = pl.multiple_of(k * tk, tk)
        b = emb_left_ref[pl.ds(off, tk), :]
        out_f32_ref[...] += jnp.dot(a, b, preferred_element_type=jnp.float32)

        @pl.when(k == pl.num_programs(1) - 1)
        def _():
            res = emb_common_ref[...] + out_f32_ref[...] + bias_ref[...]
            out_f32_ref[...] = res
            out_bf16_ref[...] = res.astype(jnp.bfloat16)
    return kernel


def _make_sub3_kernel(tk):
    def kernel(adj_ref, emb_type_ref, emb_spec_ref, bias_ref, inv_ref,
               out_ref):
        # adj:      (tm, tk)        int8  sub3 adjacency, transposed + rc-order rows
        # emb_type: (T_pad, D_pad)  bf16  VMEM-resident sub2 output
        # emb_spec: (tm, D_pad)     f32   entity embeddings (multiplicative residual)
        # bias:     (tm, 1)         f32   num_type - deg
        # inv:      (tm, 1)         f32   1 / (1 + deg)
        k = pl.program_id(1)

        @pl.when(k == 0)
        def _():
            out_ref[...] = jnp.zeros_like(out_ref)

        a = adj_ref[...].astype(jnp.float32).astype(jnp.bfloat16)
        off = pl.multiple_of(k * tk, tk)
        b = emb_type_ref[pl.ds(off, tk), :]
        out_ref[...] += jnp.dot(a, b, preferred_element_type=jnp.float32)

        @pl.when(k == pl.num_programs(1) - 1)
        def _():
            sum3 = out_ref[...] + bias_ref[...]
            out_ref[...] = emb_spec_ref[...] * (1.0 - sum3 * inv_ref[...])
    return kernel


def _vmem_limit_bytes(tm, tk, red_pad, d_pad, extra_out_bf16):
    # 2x for double buffering on every BlockSpec (conservative).
    need = (2 * tm * tk * 1                 # int8 adjacency stream
            + 2 * red_pad * d_pad * 2       # resident bf16 embedding operand
            + 2 * tm * d_pad * 4            # f32 residual
            + 2 * tm * 4 * 2                # bias / inv columns
            + 2 * tm * d_pad * 4            # f32 output (accumulator)
            + (2 * tm * d_pad * 2 if extra_out_bf16 else 0))
    # Clamp to 48 MiB: safe on v7x (64 MiB physical VMEM per core) while still
    # lifting the 16/32 MiB scoped defaults on v5e/v6e.
    return int(min(max(2 * need, 32 * 1024 * 1024), 48 * 1024 * 1024))


def _run_sub2(adj2t_i8, emb_left_bf16, emb_common_f32, bias2, *, tm, tk, vmem_limit):
    Tp, Ep = adj2t_i8.shape
    Dp = emb_left_bf16.shape[1]
    n_rows, n_red = Tp // tm, Ep // tk
    flops = 2 * Tp * Ep * Dp
    bytes_acc = (adj2t_i8.size                    # int8 adjacency once
                 + emb_left_bf16.size * 2         # resident bf16 operand once
                 + emb_common_f32.size * 4 + Tp * 4
                 + Tp * Dp * (4 + 2))             # f32 + bf16 outputs
    return pl.pallas_call(
        _make_sub2_kernel(tk),
        grid=(n_rows, n_red),
        in_specs=[pl.BlockSpec((tm, tk), lambda i, k: (i, k)),
                  pl.BlockSpec((Ep, Dp), lambda i, k: (0, 0)),   # VMEM-resident
                  pl.BlockSpec((tm, Dp), lambda i, k: (i, 0)),
                  pl.BlockSpec((tm, 1), lambda i, k: (i, 0))],
        out_specs=[pl.BlockSpec((tm, Dp), lambda i, k: (i, 0)),
                   pl.BlockSpec((tm, Dp), lambda i, k: (i, 0))],
        out_shape=(jax.ShapeDtypeStruct((Tp, Dp), jnp.float32),
                   jax.ShapeDtypeStruct((Tp, Dp), jnp.bfloat16)),
        compiler_params=pltpu.CompilerParams(
            dimension_semantics=("parallel", "arbitrary"),
            vmem_limit_bytes=vmem_limit),
        cost_estimate=pl.CostEstimate(flops=flops, transcendentals=0,
                                      bytes_accessed=bytes_acc),
    )(adj2t_i8, emb_left_bf16, emb_common_f32, bias2)


def _run_sub3(adj3t_i8, emb_type_bf16, emb_spec_f32, bias3, inv3, *, tm, tk,
              vmem_limit):
    Ep, Tp = adj3t_i8.shape
    Dp = emb_type_bf16.shape[1]
    n_rows, n_red = Ep // tm, Tp // tk
    flops = 2 * Ep * Tp * Dp
    bytes_acc = (adj3t_i8.size
                 + emb_type_bf16.size * 2
                 + emb_spec_f32.size * 4 + Ep * 8
                 + Ep * Dp * 4)
    return pl.pallas_call(
        _make_sub3_kernel(tk),
        grid=(n_rows, n_red),
        in_specs=[pl.BlockSpec((tm, tk), lambda i, k: (i, k)),
                  pl.BlockSpec((Tp, Dp), lambda i, k: (0, 0)),   # VMEM-resident
                  pl.BlockSpec((tm, Dp), lambda i, k: (i, 0)),
                  pl.BlockSpec((tm, 1), lambda i, k: (i, 0)),
                  pl.BlockSpec((tm, 1), lambda i, k: (i, 0))],
        out_specs=pl.BlockSpec((tm, Dp), lambda i, k: (i, 0)),
        out_shape=jax.ShapeDtypeStruct((Ep, Dp), jnp.float32),
        compiler_params=pltpu.CompilerParams(
            dimension_semantics=("parallel", "arbitrary"),
            vmem_limit_bytes=vmem_limit),
        cost_estimate=pl.CostEstimate(flops=flops, transcendentals=0,
                                      bytes_accessed=bytes_acc),
    )(adj3t_i8, emb_type_bf16, emb_spec_f32, bias3, inv3)


# ----------------------------------------------------------------------------
# Module forward (G1 sub2 -> sub3 update)
# ----------------------------------------------------------------------------
def g1_sub2_and_sub3_update(all_node_embedding, graph_sub2, graph_sub3,
                            num_entity, num_type):
    emb = jnp.asarray(all_node_embedding, dtype=jnp.float32)
    num_nodes, D = emb.shape
    E, T = num_entity, num_type

    # ---- host-side graph preprocessing ------------------------------------
    left_specific, right_common, adj2 = build_sub2(graph_sub2, E, T)
    left_common, right_specific, adj3 = build_sub3(graph_sub3, T, E)
    assert len(left_specific) == E and len(right_common) == T
    assert len(left_common) == T and len(right_specific) == E

    # Tiles: as big as possible (mem-bound), 128-aligned, but keep >= 2 tiles
    # on the parallel row axis when the extent allows it (v7x megacore).
    tile_T, T_pad = _pick_tile(T)
    tile_E, E_pad = _pick_tile(E)
    D_pad = _round_up(D, 128)
    # TODO(synk): if D grows beyond 128 and the kernel becomes compute-bound,
    # pad D to a 256 multiple on v6e/v7x to fill their 2x256^2 MXUs.

    vmem2 = _vmem_limit_bytes(tile_T, tile_E, E_pad, D_pad, extra_out_bf16=True)
    vmem3 = _vmem_limit_bytes(tile_E, tile_T, T_pad, D_pad, extra_out_bf16=False)

    # sub2 adjacency (transposed, int8) and per-row degree bias.
    adj2t_np = np.zeros((T_pad, E_pad), dtype=np.int8)
    adj2t_np[:T, :E] = adj2.T.astype(np.int8)
    deg2 = adj2.sum(axis=0)                                   # (T,)
    bias2_np = np.zeros((T_pad, 1), dtype=np.float32)
    bias2_np[:T, 0] = np.float32(E) - deg2

    # sub3 adjacency: rows re-ordered from left_common order to right_common
    # order so the fresh sub2 bf16 output feeds sub3 directly (no scatter/
    # gather roundtrip through the full embedding table).
    lc_pos = {node: i for i, node in enumerate(left_common)}
    perm = np.asarray([lc_pos[n] for n in right_common], dtype=np.int64)
    adj3_rc = adj3[perm, :]                                   # (T, E)
    adj3t_np = np.zeros((E_pad, T_pad), dtype=np.int8)
    adj3t_np[:E, :T] = adj3_rc.T.astype(np.int8)
    deg3 = adj3.sum(axis=0)                                   # (E,)
    bias3_np = np.zeros((E_pad, 1), dtype=np.float32)
    bias3_np[:E, 0] = np.float32(T) - deg3
    inv3_np = np.ones((E_pad, 1), dtype=np.float32)
    inv3_np[:E, 0] = 1.0 / (1.0 + deg3)

    # Padded gather indices (padded entries point at an extra all-zero row).
    def pad_idx(idx_list, n_pad):
        idx = np.full((n_pad,), num_nodes, dtype=np.int32)
        idx[:len(idx_list)] = np.asarray(idx_list, dtype=np.int32)
        return jnp.asarray(idx)

    ls_idx = pad_idx(left_specific, E_pad)
    rc_idx = pad_idx(right_common, T_pad)
    rs_idx = pad_idx(right_specific, E_pad)

    adj2t_d = jnp.asarray(adj2t_np)
    adj3t_d = jnp.asarray(adj3t_np)
    bias2_d = jnp.asarray(bias2_np)
    bias3_d = jnp.asarray(bias3_np)
    inv3_d = jnp.asarray(inv3_np)

    # ---- device part: gathers + two Pallas kernels + scatters in one jit ---
    @jax.jit
    def device_fwd(emb, ls_idx, rc_idx, rs_idx,
                   adj2t_d, adj3t_d, bias2_d, bias3_d, inv3_d):
        embp = jnp.pad(emb, ((0, 1), (0, D_pad - D)))         # zero row + lane pad
        emb_left = embp[ls_idx].astype(jnp.bfloat16)          # (E_pad, D_pad) bf16
        emb_common = embp[rc_idx]                              # (T_pad, D_pad) f32

        new_common_f32, new_common_bf16 = _run_sub2(
            adj2t_d, emb_left, emb_common, bias2_d,
            tm=tile_T, tk=tile_E, vmem_limit=vmem2)

        emb_spec = embp[rs_idx]                                # (E_pad, D_pad) f32
        new_spec = _run_sub3(
            adj3t_d, new_common_bf16, emb_spec, bias3_d, inv3_d,
            tm=tile_E, tk=tile_T, vmem_limit=vmem3)            # (E_pad, D_pad) f32

        out = emb.at[rc_idx[:T]].set(new_common_f32[:T, :D])
        out = out.at[rs_idx[:E]].set(new_spec[:E, :D])
        return out

    return device_fwd(emb, ls_idx, rc_idx, rs_idx,
                      adj2t_d, adj3t_d, bias2_d, bias3_d, inv3_d)


# ----------------------------------------------------------------------------
# Pure numpy reference (follows the torch code, with the intended sub3 fix)
# ----------------------------------------------------------------------------
def reference(emb_in, graph_sub2, graph_sub3, num_entity, num_type, dim):
    emb = np.array(emb_in, dtype=np.float32).copy()

    left_specific, right_common, adj2 = build_sub2(graph_sub2, num_entity, num_type)
    three2 = np.ones((num_entity, num_type, dim), dtype=np.float32)
    rr, cc = adj2.nonzero()
    for i in range(len(rr)):
        three2[rr[i], cc[i], :] = emb[left_specific[rr[i]], :]
    common = emb[right_common]
    emb[right_common] = common + three2.sum(0)

    left_common, right_specific, adj3 = build_sub3(graph_sub3, num_type, num_entity)
    three3 = np.ones((num_type, num_entity, dim), dtype=np.float32)
    rr, cc = adj3.nonzero()
    for i in range(len(rr)):
        three3[rr[i], cc[i], :] = emb[left_common[rr[i]], :]
    sum_arr = np.ones((num_entity, 1), dtype=np.float32)
    for c in cc:
        sum_arr[c, 0] += 1.0
    Iarr = np.ones((num_entity, dim), dtype=np.float32)
    spec = emb[right_specific]
    emb[right_specific] = spec * (Iarr - three3.sum(0) / sum_arr)
    return emb


# ----------------------------------------------------------------------------
if __name__ == "__main__":
    # Small deterministic problem sized to exercise multi-tile grids:
    #   160 entity nodes (ids 0..159), 24 type nodes (ids 160..183), dim 32.
    #   -> E_pad = 256 (2 row tiles for sub3 / 2 reduction tiles for sub2),
    #      T_pad = 128, D_pad = 128.
    num_entity = 160
    num_type = 24
    dim = 32
    num_nodes = num_entity + num_type

    graph_sub2 = {e: [num_entity + (e % num_type),
                      num_entity + ((e + 7) % num_type)]
                  for e in range(num_entity)}
    graph_sub3 = {num_entity + t: list(range(t, num_entity, num_type))
                  for t in range(num_type)}

    key = jax.random.PRNGKey(0)
    all_node_embedding = jax.random.normal(key, (num_nodes, dim), dtype=jnp.float32)

    out = g1_sub2_and_sub3_update(all_node_embedding, graph_sub2, graph_sub3,
                                  num_entity, num_type)
    out = jax.block_until_ready(out)

    ref = reference(np.asarray(all_node_embedding), graph_sub2, graph_sub3,
                    num_entity, num_type, dim)
    # bf16 matmul operands (f32 accumulation) -> ~8 lost mantissa bits on the
    # neighbourhood sums (and on the sub2 residual+bias as it feeds sub3 in
    # bf16); tolerance loosened accordingly.
    err = np.max(np.abs(np.asarray(out) - ref))
    assert np.allclose(np.asarray(out), ref, rtol=3e-2, atol=3e-2), err

    print("KERNEL_OK")
</pallas_src>

<mosaic_0001>
module attributes {stable_mosaic.version = 11 : i64} {
  func.func @kernel(%arg0: i32, %arg1: i32, %arg2: memref<128x128xi8, #tpu.memory_space<vmem>>, %arg3: memref<256x128xbf16, #tpu.memory_space<vmem>>, %arg4: memref<128x128xf32, #tpu.memory_space<vmem>>, %arg5: memref<128x1xf32, #tpu.memory_space<vmem>>, %arg6: memref<128x128xf32, #tpu.memory_space<vmem>>, %arg7: memref<128x128xbf16, #tpu.memory_space<vmem>>) attributes {dimension_semantics = [#tpu.dimension_semantics<parallel>, #tpu.dimension_semantics<arbitrary>], iteration_bounds = array<i64: 1, 2>, scalar_prefetch = 0 : i64, scratch_operands = 0 : i64, tpu.core_type = #tpu.core_type<tc>, window_params = [{transform_indices = @transform_0, window_bounds = array<i64: 128, 128>}, {pipeline_mode = #tpu.pipeline_mode<synchronous>, transform_indices = @transform_1, window_bounds = array<i64: 256, 128>}, {transform_indices = @transform_2, window_bounds = array<i64: 128, 128>}, {transform_indices = @transform_3, window_bounds = array<i64: 128, 1>}, {transform_indices = @transform_4, window_bounds = array<i64: 128, 128>}, {transform_indices = @transform_5, window_bounds = array<i64: 128, 128>}]} {
    %c0_i32 = arith.constant 0 : i32
    %0 = arith.cmpi eq, %arg1, %c0_i32 : i32
    %1 = arith.extui %0 : i1 to i32
    %c0_i32_0 = arith.constant 0 : i32
    %2 = arith.cmpi ne, %1, %c0_i32_0 : i32
    scf.if %2 {
      %cst_8 = arith.constant 0.000000e+00 : f32
      %17 = vector.broadcast %cst_8 : f32 to vector<128x128xf32>
      %c0_9 = arith.constant 0 : index
      %c0_10 = arith.constant 0 : index
      %18 = vector.load %arg6[%c0_9, %c0_10] : memref<128x128xf32, #tpu.memory_space<vmem>>, vector<128x128xf32>
      tpu.vector_store %arg6[%c0_9, %c0_10], %17 {strides = array<i32>} : memref<128x128xf32, #tpu.memory_space<vmem>>, vector<128x128xf32>,
    } else {
    }
    %c0 = arith.constant 0 : index
    %c0_1 = arith.constant 0 : index
    %3 = vector.load %arg2[%c0, %c0_1] : memref<128x128xi8, #tpu.memory_space<vmem>>, vector<128x128xi8>
    %4 = arith.sitofp %3 : vector<128x128xi8> to vector<128x128xf32>
    %5 = arith.truncf %4 : vector<128x128xf32> to vector<128x128xbf16>
    %c128_i32 = arith.constant 128 : i32
    %6 = arith.muli %arg1, %c128_i32 : i32
    %7 = tpu.assume_multiple %6, 128 : i32
    %8 = arith.index_cast %7 : i32 to index
    %c0_2 = arith.constant 0 : index
    %9 = vector.load %arg3[%8, %c0_2] : memref<256x128xbf16, #tpu.memory_space<vmem>>, vector<128x128xbf16>
    %c0_3 = arith.constant 0 : index
    %c0_4 = arith.constant 0 : index
    %10 = vector.load %arg6[%c0_3, %c0_4] : memref<128x128xf32, #tpu.memory_space<vmem>>, vector<128x128xf32>
    %cst = arith.constant dense<0.000000e+00> : vector<128x128xf32>
    %11 = tpu.matmul %5, %9, %cst {dimension_numbers = #tpu.dot_dimension_numbers<[1], [0], [0], [1], [0, 0, 1, 1], [], []>} : vector<128x128xbf16>, vector<128x128xbf16>, vector<128x128xf32> -> vector<128x128xf32>
    %12 = arith.addf %10, %11 : vector<128x128xf32>
    %c0_5 = arith.constant 0 : index
    %c0_6 = arith.constant 0 : index
    %13 = vector.load %arg6[%c0_5, %c0_6] : memref<128x128xf32, #tpu.memory_space<vmem>>, vector<128x128xf32>
    tpu.vector_store %arg6[%c0_5, %c0_6], %12 {strides = array<i32>} : memref<128x128xf32, #tpu.memory_space<vmem>>, vector<128x128xf32>,
    %c1_i32 = arith.constant 1 : i32
    %14 = arith.cmpi eq, %arg1, %c1_i32 : i32
    %15 = arith.extui %14 : i1 to i32
    %c0_i32_7 = arith.constant 0 : i32
    %16 = arith.cmpi ne, %15, %c0_i32_7 : i32
    scf.if %16 {
      %c0_8 = arith.constant 0 : index
      %c0_9 = arith.constant 0 : index
      %17 = vector.load %arg4[%c0_8, %c0_9] : memref<128x128xf32, #tpu.memory_space<vmem>>, vector<128x128xf32>
      %c0_10 = arith.constant 0 : index
      %c0_11 = arith.constant 0 : index
      %18 = vector.load %arg6[%c0_10, %c0_11] : memref<128x128xf32, #tpu.memory_space<vmem>>, vector<128x128xf32>
      %19 = arith.addf %17, %18 : vector<128x128xf32>
      %c0_12 = arith.constant 0 : index
      %c0_13 = arith.constant 0 : index
      %20 = vector.load %arg5[%c0_12, %c0_13] : memref<128x1xf32, #tpu.memory_space<vmem>>, vector<128x1xf32>
      %21 = vector.broadcast %20 : vector<128x1xf32> to vector<128x128xf32>
      %22 = arith.addf %19, %21 : vector<128x128xf32>
      %c0_14 = arith.constant 0 : index
      %c0_15 = arith.constant 0 : index
      %23 = vector.load %arg6[%c0_14, %c0_15] : memref<128x128xf32, #tpu.memory_space<vmem>>, vector<128x128xf32>
      tpu.vector_store %arg6[%c0_14, %c0_15], %22 {strides = array<i32>} : memref<128x128xf32, #tpu.memory_space<vmem>>, vector<128x128xf32>,
      %24 = arith.truncf %22 : vector<128x128xf32> to vector<128x128xbf16>
      %c0_16 = arith.constant 0 : index
      %c0_17 = arith.constant 0 : index
      %25 = vector.load %arg7[%c0_16, %c0_17] : memref<128x128xbf16, #tpu.memory_space<vmem>>, vector<128x128xbf16>
      tpu.vector_store %arg7[%c0_16, %c0_17], %24 {strides = array<i32>} : memref<128x128xbf16, #tpu.memory_space<vmem>>, vector<128x128xbf16>,
    } else {
    }
    return
  }
  func.func @transform_0(%arg0: i32, %arg1: i32) -> (i32, i32) {
    %c0_i32 = arith.constant 0 : i32
    return %arg0, %arg1 : i32, i32
  }
  func.func @transform_1(%arg0: i32, %arg1: i32) -> (i32, i32) {
    %c0_i32 = arith.constant 0 : i32
    %c0_i32_0 = arith.constant 0 : i32
    %c0_i32_1 = arith.constant 0 : i32
    return %c0_i32, %c0_i32_0 : i32, i32
  }
  func.func @transform_2(%arg0: i32, %arg1: i32) -> (i32, i32) {
    %c0_i32 = arith.constant 0 : i32
    %c0_i32_0 = arith.constant 0 : i32
    return %arg0, %c0_i32 : i32, i32
  }
  func.func @transform_3(%arg0: i32, %arg1: i32) -> (i32, i32) {
    %c0_i32 = arith.constant 0 : i32
    %c0_i32_0 = arith.constant 0 : i32
    return %arg0, %c0_i32 : i32, i32
  }
  func.func @transform_4(%arg0: i32, %arg1: i32) -> (i32, i32) {
    %c0_i32 = arith.constant 0 : i32
    %c0_i32_0 = arith.constant 0 : i32
    return %arg0, %c0_i32 : i32, i32
  }
  func.func @transform_5(%arg0: i32, %arg1: i32) -> (i32, i32) {
    %c0_i32 = arith.constant 0 : i32
    %c0_i32_0 = arith.constant 0 : i32
    return %arg0, %c0_i32 : i32, i32
  }
}

module attributes {stable_mosaic.version = 11 : i64} {
  func.func @kernel(%arg0: i32, %arg1: i32, %arg2: memref<128x128xi8, #tpu.memory_space<vmem>>, %arg3: memref<128x128xbf16, #tpu.memory_space<vmem>>, %arg4: memref<128x128xf32, #tpu.memory_space<vmem>>, %arg5: memref<128x1xf32, #tpu.memory_space<vmem>>, %arg6: memref<128x1xf32, #tpu.memory_space<vmem>>, %arg7: memref<128x128xf32, #tpu.memory_space<vmem>>) attributes {dimension_semantics = [#tpu.dimension_semantics<parallel>, #tpu.dimension_semantics<arbitrary>], iteration_bounds = array<i64: 2, 1>, scalar_prefetch = 0 : i64, scratch_operands = 0 : i64, tpu.core_type = #tpu.core_type<tc>, window_params = [{transform_indices = @transform_0, window_bounds = array<i64: 128, 128>}, {pipeline_mode = #tpu.pipeline_mode<synchronous>, transform_indices = @transform_1, window_bounds = array<i64: 128, 128>}, {transform_indices = @transform_2, window_bounds = array<i64: 128, 128>}, {transform_indices = @transform_3, window_bounds = array<i64: 128, 1>}, {transform_indices = @transform_4, window_bounds = array<i64: 128, 1>}, {transform_indices = @transform_5, window_bounds = array<i64: 128, 128>}]} {
    %c0_i32 = arith.constant 0 : i32
    %0 = arith.cmpi eq, %arg1, %c0_i32 : i32
    %1 = arith.extui %0 : i1 to i32
    %c0_i32_0 = arith.constant 0 : i32
    %2 = arith.cmpi ne, %1, %c0_i32_0 : i32
    scf.if %2 {
      %cst_9 = arith.constant 0.000000e+00 : f32
      %17 = vector.broadcast %cst_9 : f32 to vector<128x128xf32>
      %c0_10 = arith.constant 0 : index
      %c0_11 = arith.constant 0 : index
      %18 = vector.load %arg7[%c0_10, %c0_11] : memref<128x128xf32, #tpu.memory_space<vmem>>, vector<128x128xf32>
      tpu.vector_store %arg7[%c0_10, %c0_11], %17 {strides = array<i32>} : memref<128x128xf32, #tpu.memory_space<vmem>>, vector<128x128xf32>,
    } else {
    }
    %c0 = arith.constant 0 : index
    %c0_1 = arith.constant 0 : index
    %3 = vector.load %arg2[%c0, %c0_1] : memref<128x128xi8, #tpu.memory_space<vmem>>, vector<128x128xi8>
    %4 = arith.sitofp %3 : vector<128x128xi8> to vector<128x128xf32>
    %5 = arith.truncf %4 : vector<128x128xf32> to vector<128x128xbf16>
    %c128_i32 = arith.constant 128 : i32
    %6 = arith.muli %arg1, %c128_i32 : i32
    %7 = tpu.assume_multiple %6, 128 : i32
    %8 = arith.index_cast %7 : i32 to index
    %c0_2 = arith.constant 0 : index
    %9 = vector.load %arg3[%8, %c0_2] : memref<128x128xbf16, #tpu.memory_space<vmem>>, vector<128x128xbf16>
    %c0_3 = arith.constant 0 : index
    %c0_4 = arith.constant 0 : index
    %10 = vector.load %arg7[%c0_3, %c0_4] : memref<128x128xf32, #tpu.memory_space<vmem>>, vector<128x128xf32>
    %cst = arith.constant dense<0.000000e+00> : vector<128x128xf32>
    %11 = tpu.matmul %5, %9, %cst {dimension_numbers = #tpu.dot_dimension_numbers<[1], [0], [0], [1], [0, 0, 1, 1], [], []>} : vector<128x128xbf16>, vector<128x128xbf16>, vector<128x128xf32> -> vector<128x128xf32>
    %12 = arith.addf %10, %11 : vector<128x128xf32>
    %c0_5 = arith.constant 0 : index
    %c0_6 = arith.constant 0 : index
    %13 = vector.load %arg7[%c0_5, %c0_6] : memref<128x128xf32, #tpu.memory_space<vmem>>, vector<128x128xf32>
    tpu.vector_store %arg7[%c0_5, %c0_6], %12 {strides = array<i32>} : memref<128x128xf32, #tpu.memory_space<vmem>>, vector<128x128xf32>,
    %c0_i32_7 = arith.constant 0 : i32
    %14 = arith.cmpi eq, %arg1, %c0_i32_7 : i32
    %15 = arith.extui %14 : i1 to i32
    %c0_i32_8 = arith.constant 0 : i32
    %16 = arith.cmpi ne, %15, %c0_i32_8 : i32
    scf.if %16 {
      %c0_9 = arith.constant 0 : index
      %c0_10 = arith.constant 0 : index
      %17 = vector.load %arg7[%c0_9, %c0_10] : memref<128x128xf32, #tpu.memory_space<vmem>>, vector<128x128xf32>
      %c0_11 = arith.constant 0 : index
      %c0_12 = arith.constant 0 : index
      %18 = vector.load %arg5[%c0_11, %c0_12] : memref<128x1xf32, #tpu.memory_space<vmem>>, vector<128x1xf32>
      %19 = vector.broadcast %18 : vector<128x1xf32> to vector<128x128xf32>
      %20 = arith.addf %17, %19 : vector<128x128xf32>
      %c0_13 = arith.constant 0 : index
      %c0_14 = arith.constant 0 : index
      %21 = vector.load %arg4[%c0_13, %c0_14] : memref<128x128xf32, #tpu.memory_space<vmem>>, vector<128x128xf32>
      %c0_15 = arith.constant 0 : index
      %c0_16 = arith.constant 0 : index
      %22 = vector.load %arg6[%c0_15, %c0_16] : memref<128x1xf32, #tpu.memory_space<vmem>>, vector<128x1xf32>
      %23 = vector.broadcast %22 : vector<128x1xf32> to vector<128x128xf32>
      %24 = arith.mulf %20, %23 : vector<128x128xf32>
      %cst_17 = arith.constant 1.000000e+00 : f32
      %25 = vector.broadcast %cst_17 : f32 to vector<128x128xf32>
      %26 = arith.subf %25, %24 : vector<128x128xf32>
      %27 = arith.mulf %21, %26 : vector<128x128xf32>
      %c0_18 = arith.constant 0 : index
      %c0_19 = arith.constant 0 : index
      %28 = vector.load %arg7[%c0_18, %c0_19] : memref<128x128xf32, #tpu.memory_space<vmem>>, vector<128x128xf32>
      tpu.vector_store %arg7[%c0_18, %c0_19], %27 {strides = array<i32>} : memref<128x128xf32, #tpu.memory_space<vmem>>, vector<128x128xf32>,
    } else {
    }
    return
  }
  func.func @transform_0(%arg0: i32, %arg1: i32) -> (i32, i32) {
    %c0_i32 = arith.constant 0 : i32
    return %arg0, %arg1 : i32, i32
  }
  func.func @transform_1(%arg0: i32, %arg1: i32) -> (i32, i32) {
    %c0_i32 = arith.constant 0 : i32
    %c0_i32_0 = arith.constant 0 : i32
    %c0_i32_1 = arith.constant 0 : i32
    return %c0_i32, %c0_i32_0 : i32, i32
  }
  func.func @transform_2(%arg0: i32, %arg1: i32) -> (i32, i32) {
    %c0_i32 = arith.constant 0 : i32
    %c0_i32_0 = arith.constant 0 : i32
    return %arg0, %c0_i32 : i32, i32
  }
  func.func @transform_3(%arg0: i32, %arg1: i32) -> (i32, i32) {
    %c0_i32 = arith.constant 0 : i32
    %c0_i32_0 = arith.constant 0 : i32
    return %arg0, %c0_i32 : i32, i32
  }
  func.func @transform_4(%arg0: i32, %arg1: i32) -> (i32, i32) {
    %c0_i32 = arith.constant 0 : i32
    %c0_i32_0 = arith.constant 0 : i32
    return %arg0, %c0_i32 : i32, i32
  }
  func.func @transform_5(%arg0: i32, %arg1: i32) -> (i32, i32) {
    %c0_i32 = arith.constant 0 : i32
    %c0_i32_0 = arith.constant 0 : i32
    return %arg0, %c0_i32 : i32, i32
  }
}

</mosaic_0001>

<llo_original>
// kernel: device_fwd.3
$region0: #{device_fwd.3}
  #allocation0 [shape = 'u32[]', space=smem, size = 0x4, offset = 0x4, fixed_abs, tag = 'smem constant byte address 0x4 - core index']
  #allocation1 [shape = 'u32[72,128]{1,0:T(1,128)}', space=vmem, size = 0x9000, scoped, tag = 'internal scratch']
  %s0 = inlined_call_operand.vmem [shape: s8[256,128], index: 0, kind: input, shape index: {}]
  %s1 = inlined_call_operand.vmem [shape: bf16[128,128], index: 1, kind: input, shape index: {}]
  %s2 = inlined_call_operand.vmem [shape: f32[256,128], index: 2, kind: input, shape index: {}]
  %s3 = inlined_call_operand.vmem [shape: f32[256,1], index: 3, kind: input, shape index: {}]
  %s4 = inlined_call_operand.vmem [shape: f32[256,1], index: 4, kind: input, shape index: {}]
  %s5 = inlined_call_operand.vmem [shape: f32[256,128], index: 5, kind: output, shape index: {}]
  %s6 = sld [smem:[#allocation0]]
  $region61: #{device_fwd.3} parent=0
    _
  %s8 = ssub.s32 1, %s6
  %s9 = scalar_select 0, %s8, %s6
  loop: start=0, step=1, limit=4
  $region2: #{device_fwd.3} parent=0 // loop_pre_header
    _
  $region3: #{device_fwd.3} parent=0 // loop_header
    %s11 = sphi 0, %s15
    %p12 = scmp.ge.s32.totalorder %s11, 4
    %s18 = sphi 0, %s30
    %s19 = sphi 0, %s26
    %s20 = sphi 0, %s18
    %s21 = sphi 0, %s19
    %s22 = sphi 0, %s20
    %s23 = sphi 0, %s21
    %s35 = sphi 0, %s37
    %s38 = sphi 0, %s35
    %s39 = sphi 0, %s38
    %s55 = sphi 0, %s39
    %s59 = sphi 0, %s59
    %s61 = sphi 0, %s59
    %s62 = sphi 0, %s61
    %s76 = sphi 0, %s62
    %s82 = sphi 0, %s84
    %s85 = sphi 0, %s82
    %s86 = sphi 0, %s85
    %s102 = sphi 0, %s86
    %s108 = sphi 0, %s110
    %s111 = sphi 0, %s108
    %s112 = sphi 0, %s111
    %s128 = sphi 0, %s112
    %s134 = sphi 0, %s136
    %s137 = sphi 0, %s134
    %s138 = sphi 0, %s137
    %s154 = sphi 0, %s138
    %s160 = sphi 0, %s162
    %s163 = sphi 0, %s160
    %s164 = sphi 0, %s163
    %s180 = sphi 0, %s164
  $region4: #{device_fwd.3} parent=0 // loop_header_branch
    %14 = sbr.rel (%p12) target = $region8
  $region5: #{device_fwd.3} parent=0 // loop_body
    %s16 = ssub.s32 %s11, 1
    %s17 = ssub.s32 %s11, 2
    %s24 = sadd.s32 1, %s19
    %p25 = scmp.ge.s32.totalorder %s24, 1
    %s26 = scalar_select %p25, 0, %s24
    %s27 = sadd.s32 1, %s18
    %s28 = scalar_select %p25, %s27, %s18
    %p29 = scmp.ge.s32.totalorder %s28, 2
    %s30 = scalar_select %p29, 0, %s28
    %s31 = ssub.s32 %s18, %s30
    %s32 = ssub.s32 %s19, %s26
    %s33 = sor.u32 %s31, %s32
    %p34 = scmp.eq.s32.totalorder %s33, 0
    %s36 = sadd.s32 %s35, 1
    %s37 = scalar_select %p34, %s35, %s36
    %p40 = pneg %p34
    %p41 = scmp.eq.s32.totalorder %s11, 1
    %p42 = por %p40, %p41
    %p43 = scmp.ne.s32.totalorder %s35, %s38
    %p44 = scmp.eq.s32.totalorder %s11, 0
    %p45 = por %p43, %p44
    %p46 = scmp.ne.s32.totalorder %s35, %s38
    %p47 = scmp.eq.s32.totalorder %s16, 1
    %p48 = por %p46, %p47
    %p49 = scmp.ne.s32.totalorder %s38, %s39
    %p50 = scmp.eq.s32.totalorder %s16, 0
    %p51 = por %p49, %p50
    %p52 = scmp.ne.s32.totalorder %s38, %s39
    %p53 = scmp.eq.s32.totalorder %s17, 1
    %p54 = por %p52, %p53
    %p56 = scmp.ne.s32.totalorder %s39, %s55
    %p57 = scmp.eq.s32.totalorder %s17, 0
    %p58 = por %p56, %p57
    %s60 = sadd.s32 %s59, 1
    %p63 = scmp.eq.s32.totalorder %s11, 1
    %p64 = scmp.ne.s32.totalorder %s59, %s61
    %p65 = scmp.eq.s32.totalorder %s11, 0
    %p66 = por %p64, %p65
    %p67 = scmp.ne.s32.totalorder %s59, %s61
    %p68 = scmp.eq.s32.totalorder %s16, 1
    %p69 = por %p67, %p68
    %p70 = scmp.ne.s32.totalorder %s61, %s62
    %p71 = scmp.eq.s32.totalorder %s16, 0
    %p72 = por %p70, %p71
    %p73 = scmp.ne.s32.totalorder %s61, %s62
    %p74 = scmp.eq.s32.totalorder %s17, 1
    %p75 = por %p73, %p74
    %p77 = scmp.ne.s32.totalorder %s62, %s76
    %p78 = scmp.eq.s32.totalorder %s17, 0
    %p79 = por %p77, %p78
    %s80 = ssub.s32 %s18, %s30
    %p81 = scmp.eq.s32.totalorder %s80, 0
    %s83 = sadd.s32 %s82, 1
    %s84 = scalar_select %p81, %s82, %s83
    %p87 = pneg %p81
    %p88 = scmp.eq.s32.totalorder %s11, 1
    %p89 = por %p87, %p88
    %p90 = scmp.ne.s32.totalorder %s82, %s85
    %p91 = scmp.eq.s32.totalorder %s11, 0
    %p92 = por %p90, %p91
    %p93 = scmp.ne.s32.totalorder %s82, %s85
    %p94 = scmp.eq.s32.totalorder %s16, 1
    %p95 = por %p93, %p94
    %p96 = scmp.ne.s32.totalorder %s85, %s86
    %p97 = scmp.eq.s32.totalorder %s16, 0
    %p98 = por %p96, %p97
    %p99 = scmp.ne.s32.totalorder %s85, %s86
    %p100 = scmp.eq.s32.totalorder %s17, 1
    %p101 = por %p99, %p100
    %p103 = scmp.ne.s32.totalorder %s86, %s102
    %p104 = scmp.eq.s32.totalorder %s17, 0
    %p105 = por %p103, %p104
    %s106 = ssub.s32 %s18, %s30
    %p107 = scmp.eq.s32.totalorder %s106, 0
    %s109 = sadd.s32 %s108, 1
    %s110 = scalar_select %p107, %s108, %s109
    %p113 = pneg %p107
    %p114 = scmp.eq.s32.totalorder %s11, 1
    %p115 = por %p113, %p114
    %p116 = scmp.ne.s32.totalorder %s108, %s111
    %p117 = scmp.eq.s32.totalorder %s11, 0
    %p118 = por %p116, %p117
    %p119 = scmp.ne.s32.totalorder %s108, %s111
    %p120 = scmp.eq.s32.totalorder %s16, 1
    %p121 = por %p119, %p120
    %p122 = scmp.ne.s32.totalorder %s111, %s112
    %p123 = scmp.eq.s32.totalorder %s16, 0
    %p124 = por %p122, %p123
    %p125 = scmp.ne.s32.totalorder %s111, %s112
    %p126 = scmp.eq.s32.totalorder %s17, 1
    %p127 = por %p125, %p126
    %p129 = scmp.ne.s32.totalorder %s112, %s128
    %p130 = scmp.eq.s32.totalorder %s17, 0
    %p131 = por %p129, %p130
    %s132 = ssub.s32 %s18, %s30
    %p133 = scmp.eq.s32.totalorder %s132, 0
    %s135 = sadd.s32 %s134, 1
    %s136 = scalar_select %p133, %s134, %s135
    %p139 = pneg %p133
    %p140 = scmp.eq.s32.totalorder %s11, 1
    %p141 = por %p139, %p140
    %p142 = scmp.ne.s32.totalorder %s134, %s137
    %p143 = scmp.eq.s32.totalorder %s11, 0
    %p144 = por %p142, %p143
    %p145 = scmp.ne.s32.totalorder %s134, %s137
    %p146 = scmp.eq.s32.totalorder %s16, 1
    %p147 = por %p145, %p146
    %p148 = scmp.ne.s32.totalorder %s137, %s138
    %p149 = scmp.eq.s32.totalorder %s16, 0
    %p150 = por %p148, %p149
    %p151 = scmp.ne.s32.totalorder %s137, %s138
    %p152 = scmp.eq.s32.totalorder %s17, 1
    %p153 = por %p151, %p152
    %p155 = scmp.ne.s32.totalorder %s138, %s154
    %p156 = scmp.eq.s32.totalorder %s17, 0
    %p157 = por %p155, %p156
    %s158 = ssub.s32 %s18, %s30
    %p159 = scmp.eq.s32.totalorder %s158, 0
    %s161 = sadd.s32 %s160, 1
    %s162 = scalar_select %p159, %s160, %s161
    %p165 = pneg %p159
    %p166 = scmp.eq.s32.totalorder %s11, 1
    %p167 = por %p165, %p166
    %p168 = scmp.ne.s32.totalorder %s160, %s163
    %p169 = scmp.eq.s32.totalorder %s11, 0
    %p170 = por %p168, %p169
    %p171 = scmp.ne.s32.totalorder %s160, %s163
    %p172 = scmp.eq.s32.totalorder %s16, 1
    %p173 = por %p171, %p172
    %p174 = scmp.ne.s32.totalorder %s163, %s164
    %p175 = scmp.eq.s32.totalorder %s16, 0
    %p176 = por %p174, %p175
    %p177 = scmp.ne.s32.totalorder %s163, %s164
    %p178 = scmp.eq.s32.totalorder %s17, 1
    %p179 = por %p177, %p178
    %p181 = scmp.ne.s32.totalorder %s164, %s180
    %p182 = scmp.eq.s32.totalorder %s17, 0
    %p183 = por %p181, %p182
    %p184 = scmp.le.s32.totalorder 1, %s11
    %p185 = scmp.lt.s32.totalorder %s11, 3
    %p186 = pnand %p184, %p185
    %p187 = pneg %p186
    // Predicated region
    $region9: #{device_fwd.3} parent=5 // pred_check
      _
    $region10: #{device_fwd.3} parent=5 // pred_check_branch
      %189 = sbr.rel (%p186) target = $region12
    $region11: #{device_fwd.3} parent=5 // pred_region
      %s190 = ssub.s32 %s11, 1
      // Predicated region
      $region13: #{device_fwd.3} parent=11 // pred_check
        %p191 = pneg %p72
      $region14: #{device_fwd.3} parent=11 // pred_check_branch
        %193 = sbr.rel (%p191) target = $region16
      $region15: #{device_fwd.3} parent=11 // pred_region
        _
      $region16: #{device_fwd.3} parent=11 // pred_fallthru
        _
    $region12: #{device_fwd.3} parent=5 // pred_fallthru
      _
    %p194 = scmp.lt.s32.totalorder %s11, 2
    // Predicated region
    $region17: #{device_fwd.3} parent=5 // pred_check
      %p195 = pneg %p194
    $region18: #{device_fwd.3} parent=5 // pred_check_branch
      %197 = sbr.rel (%p195) target = $region20
    $region19: #{device_fwd.3} parent=5 // pred_region
      // Predicated region
      $region21: #{device_fwd.3} parent=19 // pred_check
        %p198 = pneg %p45
      $region22: #{device_fwd.3} parent=19 // pred_check_branch
        %200 = sbr.rel (%p198) target = $region24
      $region23: #{device_fwd.3} parent=19 // pred_region
        %s201 = smul.u32 4, %s18
        %p202 = scmp.lt.s32.totalorder %s201, 7
        %s203 = scalar_select %p202, %s201, 7
        %p204 = scmp.lt.s32.totalorder %s19, 0
        %s205 = scalar_select %p204, %s19, 0
        %s206 = sadd.s32 %s205, %s203
        %s207 = smul.addr %s206, 8
        %s208 = scalar_lea.vmem %s0, %s207
        %s209 = smul.u32 4, %s18
      $region24: #{device_fwd.3} parent=19 // pred_fallthru
        _
      // Predicated region
      $region25: #{device_fwd.3} parent=19 // pred_check
        %p210 = pneg %p92
      $region26: #{device_fwd.3} parent=19 // pred_check_branch
        %212 = sbr.rel (%p210) target = $region28
      $region27: #{device_fwd.3} parent=19 // pred_region
        %s213 = smul.u32 16, %s18
        %p214 = scmp.lt.s32.totalorder %s213, 31
        %s215 = scalar_select %p214, %s213, 31
        %s216 = smul.addr %s215, 8
        %s217 = scalar_lea.vmem %s2, %s216
        %s218 = smul.u32 16, %s18
      $region28: #{device_fwd.3} parent=19 // pred_fallthru
        _
      // Predicated region
      $region29: #{device_fwd.3} parent=19 // pred_check
        %p219 = pneg %p118
      $region30: #{device_fwd.3} parent=19 // pred_check_branch
        %221 = sbr.rel (%p219) target = $region32
      $region31: #{device_fwd.3} parent=19 // pred_region
        %s222 = smul.u32 16, %s18
        %p223 = scmp.lt.s32.totalorder %s222, 31
        %s224 = scalar_select %p223, %s222, 31
        %s225 = smul.addr %s224, 8
        %s226 = scalar_lea.vmem %s3, %s225
        %s227 = smul.u32 16, %s18
      $region32: #{device_fwd.3} parent=19 // pred_fallthru
        _
      // Predicated region
      $region33: #{device_fwd.3} parent=19 // pred_check
        %p228 = pneg %p144
      $region34: #{device_fwd.3} parent=19 // pred_check_branch
        %230 = sbr.rel (%p228) target = $region36
      $region35: #{device_fwd.3} parent=19 // pred_region
        %s231 = smul.u32 16, %s18
        %p232 = scmp.lt.s32.totalorder %s231, 31
        %s233 = scalar_select %p232, %s231, 31
        %s234 = smul.addr %s233, 8
        %s235 = scalar_lea.vmem %s4, %s234
        %s236 = smul.u32 16, %s18
      $region36: #{device_fwd.3} parent=19 // pred_fallthru
        _
    $region20: #{device_fwd.3} parent=5 // pred_fallthru
      _
    %p237 = scmp.le.s32.totalorder 1, %s11
    %p238 = scmp.lt.s32.totalorder %s11, 3
    %p239 = pnand %p237, %p238
    %p240 = pneg %p239
    // Predicated region
    $region37: #{device_fwd.3} parent=5 // pred_check
      _
    $region38: #{device_fwd.3} parent=5 // pred_check_branch
      %242 = sbr.rel (%p239) target = $region40
    $region39: #{device_fwd.3} parent=5 // pred_region
      %s243 = ssub.s32 %s11, 1
      %s244 = smul.u32 4, %s20
      %p245 = scmp.lt.s32.totalorder %s244, 7
      %s246 = scalar_select %p245, %s244, 7
      %p247 = scmp.lt.s32.totalorder %s21, 0
      %s248 = scalar_select %p247, %s21, 0
      %s249 = sadd.s32 %s248, %s246
      %s250 = smul.addr %s249, 8
      %s251 = scalar_lea.vmem %s0, %s250
      %p252 = pneg %p51
      %p253 = pneg %p48
      %p254 = pneg %p72
      %p255 = pneg %p69
      %s256 = smul.u32 16, %s20
      %p257 = scmp.lt.s32.totalorder %s256, 31
      %s258 = scalar_select %p257, %s256, 31
      %s259 = smul.addr %s258, 8
      %s260 = scalar_lea.vmem %s2, %s259
      %p261 = pneg %p98
      %p262 = pneg %p95
      %s263 = smul.u32 16, %s20
      %p264 = scmp.lt.s32.totalorder %s263, 31
      %s265 = scalar_select %p264, %s263, 31
      %s266 = smul.addr %s265, 8
      %s267 = scalar_lea.vmem %s3, %s266
      %p268 = pneg %p124
      %p269 = pneg %p121
      %s270 = smul.u32 16, %s20
      %p271 = scmp.lt.s32.totalorder %s270, 31
      %s272 = scalar_select %p271, %s270, 31
      %s273 = smul.addr %s272, 8
      %s274 = scalar_lea.vmem %s4, %s273
      %p275 = pneg %p150
      %p276 = pneg %p147
      %p277 = pneg %p176
      %p278 = pneg %p173
      %s279 = smul.u32 16, %s20
      %p280 = scmp.lt.s32.totalorder %s279, 31
      %s281 = scalar_select %p280, %s279, 31
      %s282 = smul.addr %s281, 8
      %s283 = scalar_lea.vmem %s5, %s282
      %s284 = smul.u32 4, %s20
      %p285 = scmp.lt.s32.totalorder %s284, 7
      %s286 = scalar_select %p285, %s284, 7
      %p287 = scmp.lt.s32.totalorder %s21, 0
      %s288 = scalar_select %p287, %s21, 0
      %s289 = sadd.s32 %s288, %s286
      %s290 = smul.addr %s289, 8
      %s291 = scalar_lea.vmem %s0, %s290
      %s292 = smul.u32 4, %s20
      %s293 = smul.u32 16, %s20
      %p294 = scmp.lt.s32.totalorder %s293, 31
      %s295 = scalar_select %p294, %s293, 31
      %s296 = smul.addr %s295, 8
      %s297 = scalar_lea.vmem %s2, %s296
      %s298 = smul.u32 16, %s20
      %s299 = smul.u32 16, %s20
      %p300 = scmp.lt.s32.totalorder %s299, 31
      %s301 = scalar_select %p300, %s299, 31
      %s302 = smul.addr %s301, 8
      %s303 = scalar_lea.vmem %s3, %s302
      %s304 = smul.u32 16, %s20
      %s305 = smul.u32 16, %s20
      %p306 = scmp.lt.s32.totalorder %s305, 31
      %s307 = scalar_select %p306, %s305, 31
      %s308 = smul.addr %s307, 8
      %s309 = scalar_lea.vmem %s4, %s308
      %s310 = smul.u32 16, %s20
      %s311 = smul.u32 16, %s20
      %p312 = scmp.lt.s32.totalorder %s311, 31
      %s313 = scalar_select %p312, %s311, 31
      %s314 = smul.addr %s313, 8
      %s315 = scalar_lea.vmem %s5, %s314
      %s316 = smul.u32 16, %s20
      %p317 = scmp.eq.s32.totalorder %s21, 0
      // Predicated region
      $region41: #{device_fwd.3} parent=39 // pred_check
        %p318 = pneg %p317
      $region42: #{device_fwd.3} parent=39 // pred_check_branch
        %320 = sbr.rel (%p318) target = $region44
      $region43: #{device_fwd.3} parent=39 // pred_region
        %321 = vst [vmem:[%s315] sm:$0xff] 0.0
        %322 = vst [vmem:[%s315 + $0x8] sm:$0xff] 0.0
        %323 = vst [vmem:[%s315 + $0x10] sm:$0xff] 0.0
        %324 = vst [vmem:[%s315 + $0x18] sm:$0xff] 0.0
        %325 = vst [vmem:[%s315 + $0x20] sm:$0xff] 0.0
        %326 = vst [vmem:[%s315 + $0x28] sm:$0xff] 0.0
        %327 = vst [vmem:[%s315 + $0x30] sm:$0xff] 0.0
        %328 = vst [vmem:[%s315 + $0x38] sm:$0xff] 0.0
        %329 = vst [vmem:[%s315 + $0x40] sm:$0xff] 0.0
        %330 = vst [vmem:[%s315 + $0x48] sm:$0xff] 0.0
        %331 = vst [vmem:[%s315 + $0x50] sm:$0xff] 0.0
        %332 = vst [vmem:[%s315 + $0x58] sm:$0xff] 0.0
        %333 = vst [vmem:[%s315 + $0x60] sm:$0xff] 0.0
        %334 = vst [vmem:[%s315 + $0x68] sm:$0xff] 0.0
        %335 = vst [vmem:[%s315 + $0x70] sm:$0xff] 0.0
        %336 = vst [vmem:[%s315 + $0x78] sm:$0xff] 0.0
      $region44: #{device_fwd.3} parent=39 // pred_fallthru
        _
      %v337 = vld [vmem:[%s291] sm:$0xff]
      %v338 = vld [vmem:[%s291 + $0x8] sm:$0xff]
      %v339 = vld [vmem:[%s291 + $0x10] sm:$0xff]
      %v340 = vld [vmem:[%s291 + $0x18] sm:$0xff]
      %v341 = vunpack.c.0.s8 %v337
      %v342 = vunpack.c.1.s8 %v337
      %v343 = vunpack.c.2.s8 %v337
      %v344 = vunpack.c.3.s8 %v337
      %v345 = vunpack.c.0.s8 %v338
      %v346 = vunpack.c.1.s8 %v338
      %v347 = vunpack.c.2.s8 %v338
      %v348 = vunpack.c.3.s8 %v338
      %v349 = vunpack.c.0.s8 %v339
      %v350 = vunpack.c.1.s8 %v339
      %v351 = vunpack.c.2.s8 %v339
      %v352 = vunpack.c.3.s8 %v339
      %v353 = vunpack.c.0.s8 %v340
      %v354 = vunpack.c.1.s8 %v340
      %v355 = vunpack.c.2.s8 %v340
      %v356 = vunpack.c.3.s8 %v340
      %v357 = vcvt.s32.f32 %v341
      %v358 = vcvt.s32.f32 %v342
      %v359 = vcvt.s32.f32 %v343
      %v360 = vcvt.s32.f32 %v344
      %v361 = vcvt.s32.f32 %v345
      %v362 = vcvt.s32.f32 %v346
      %v363 = vcvt.s32.f32 %v347
      %v364 = vcvt.s32.f32 %v348
      %v365 = vcvt.s32.f32 %v349
      %v366 = vcvt.s32.f32 %v350
      %v367 = vcvt.s32.f32 %v351
      %v368 = vcvt.s32.f32 %v352
      %v369 = vcvt.s32.f32 %v353
      %v370 = vcvt.s32.f32 %v354
      %v371 = vcvt.s32.f32 %v355
      %v372 = vcvt.s32.f32 %v356
      %v373 = vpack.c.bf16 %v358, %v357
      %v374 = vpack.c.bf16 %v360, %v359
      %v375 = vpack.c.bf16 %v362, %v361
      %v376 = vpack.c.bf16 %v364, %v363
      %v377 = vpack.c.bf16 %v366, %v365
      %v378 = vpack.c.bf16 %v368, %v367
      %v379 = vpack.c.bf16 %v370, %v369
      %v380 = vpack.c.bf16 %v372, %v371
      %s381 = smul.u32 %s21, 128
      %s382 = sshra.s32 %s381, 3
      %s383 = sand.u32 %s381, 7
      %s384 = smul.addr %s382, 4
      %s385 = scalar_lea.vmem %s1, %s384
      %v386 = vld [vmem:[%s385] sm:$0xf]
      %v387 = vld [vmem:[%s385 + $0x4] sm:$0xf]
      %v388 = vld [vmem:[%s385 + $0x8] sm:$0xf]
      %v389 = vld [vmem:[%s385 + $0xc] sm:$0xf]
      %v390 = vld [vmem:[%s385 + $0x10] sm:$0xf]
      %v391 = vld [vmem:[%s385 + $0x14] sm:$0xf]
      %v392 = vld [vmem:[%s385 + $0x18] sm:$0xf]
      %v393 = vld [vmem:[%s385 + $0x1c] sm:$0xf]
      %v394 = vld [vmem:[%s385 + $0x20] sm:$0xf]
      %v395 = vld [vmem:[%s385 + $0x24] sm:$0xf]
      %v396 = vld [vmem:[%s385 + $0x28] sm:$0xf]
      %v397 = vld [vmem:[%s385 + $0x2c] sm:$0xf]
      %v398 = vld [vmem:[%s385 + $0x30] sm:$0xf]
      %v399 = vld [vmem:[%s385 + $0x34] sm:$0xf]
      %v400 = vld [vmem:[%s385 + $0x38] sm:$0xf]
      %v401 = vld [vmem:[%s385 + $0x3c] sm:$0xf]
      %v402 = vld [vmem:[%s315] sm:$0xff]
      %v403 = vld [vmem:[%s315 + $0x8] sm:$0xff]
      %v404 = vld [vmem:[%s315 + $0x10] sm:$0xff]
      %v405 = vld [vmem:[%s315 + $0x18] sm:$0xff]
      %v406 = vld [vmem:[%s315 + $0x20] sm:$0xff]
      %v407 = vld [vmem:[%s315 + $0x28] sm:$0xff]
      %v408 = vld [vmem:[%s315 + $0x30] sm:$0xff]
      %v409 = vld [vmem:[%s315 + $0x38] sm:$0xff]
      %v410 = vld [vmem:[%s315 + $0x40] sm:$0xff]
      %v411 = vld [vmem:[%s315 + $0x48] sm:$0xff]
      %v412 = vld [vmem:[%s315 + $0x50] sm:$0xff]
      %v413 = vld [vmem:[%s315 + $0x58] sm:$0xff]
      %v414 = vld [vmem:[%s315 + $0x60] sm:$0xff]
      %v415 = vld [vmem:[%s315 + $0x68] sm:$0xff]
      %v416 = vld [vmem:[%s315 + $0x70] sm:$0xff]
      %v417 = vld [vmem:[%s315 + $0x78] sm:$0xff]
      %v434 = vunpack.c.l.b16 %v386
      %v435 = vunpack.c.l.b16 %v387
      %v436 = vunpack.c.l.b16 %v388
      %v437 = vunpack.c.l.b16 %v389
      %v438 = vunpack.c.l.b16 %v390
      %v439 = vunpack.c.l.b16 %v391
      %v440 = vunpack.c.l.b16 %v392
      %v441 = vunpack.c.l.b16 %v393
      %v442 = vunpack.c.l.b16 %v394
      %v443 = vunpack.c.l.b16 %v395
      %v444 = vunpack.c.l.b16 %v396
      %v445 = vunpack.c.l.b16 %v397
      %v446 = vunpack.c.l.b16 %v398
      %v447 = vunpack.c.l.b16 %v399
      %v448 = vunpack.c.l.b16 %v400
      %v449 = vunpack.c.l.b16 %v401
      %v450 = vpack.c.b16 %v435, %v434
      %v451 = vpack.c.b16 %v437, %v436
      %v452 = vpack.c.b16 %v439, %v438
      %v453 = vpack.c.b16 %v441, %v440
      %v454 = vpack.c.b16 %v443, %v442
      %v455 = vpack.c.b16 %v445, %v444
      %v456 = vpack.c.b16 %v447, %v446
      %v457 = vpack.c.b16 %v449, %v448
      %466 = vmatpush.bf16.msra.mxu0 %v457
      %467 = vmatpush.bf16.msra.mxu0 %v456
      %468 = vmatpush.bf16.msra.mxu0 %v455
      %469 = vmatpush.bf16.msra.mxu0 %v454
      %470 = vmatpush.bf16.msra.mxu0 %v453
      %471 = vmatpush.bf16.msra.mxu0 %v452
      %472 = vmatpush.bf16.msra.mxu0 %v451
      %473 = vmatpush.bf16.msra.mxu0 %v450
      %474 = vmatmul.bf16.gmra.mxu0 %v373
      %v475 = vpop.f32.mrf.mxu0
      %v476 = vadd.f32 0.0, %v475
      %v477 = vpop.f32.mrf.mxu0
      %v478 = vadd.f32 0.0, %v477
      %479 = vmatmul.bf16.gmra.mxu0 %v374
      %v480 = vpop.f32.mrf.mxu0
      %v481 = vadd.f32 0.0, %v480
      %v482 = vpop.f32.mrf.mxu0
      %v483 = vadd.f32 0.0, %v482
      %484 = vmatmul.bf16.gmra.mxu0 %v375
      %v485 = vpop.f32.mrf.mxu0
      %v486 = vadd.f32 0.0, %v485
      %v487 = vpop.f32.mrf.mxu0
      %v488 = vadd.f32 0.0, %v487
      %489 = vmatmul.bf16.gmra.mxu0 %v376
      %v490 = vpop.f32.mrf.mxu0
      %v491 = vadd.f32 0.0, %v490
      %v492 = vpop.f32.mrf.mxu0
      %v493 = vadd.f32 0.0, %v492
      %494 = vmatmul.bf16.gmra.mxu0 %v377
      %v495 = vpop.f32.mrf.mxu0
      %v496 = vadd.f32 0.0, %v495
      %v497 = vpop.f32.mrf.mxu0
      %v498 = vadd.f32 0.0, %v497
      %499 = vmatmul.bf16.gmra.mxu0 %v378
      %v500 = vpop.f32.mrf.mxu0
      %v501 = vadd.f32 0.0, %v500
      %v502 = vpop.f32.mrf.mxu0
      %v503 = vadd.f32 0.0, %v502
      %504 = vmatmul.bf16.gmra.mxu0 %v379
      %v505 = vpop.f32.mrf.mxu0
      %v506 = vadd.f32 0.0, %v505
      %v507 = vpop.f32.mrf.mxu0
      %v508 = vadd.f32 0.0, %v507
      %509 = vmatmul.bf16.gmra.mxu0 %v380
      %v510 = vpop.f32.mrf.mxu0
      %v511 = vadd.f32 0.0, %v510
      %v512 = vpop.f32.mrf.mxu0
      %v513 = vadd.f32 0.0, %v512
      %514 = vdwg.mxu0
      %v515 = vadd.f32 %v402, %v476
      %v516 = vadd.f32 %v403, %v478
      %v517 = vadd.f32 %v404, %v481
      %v518 = vadd.f32 %v405, %v483
      %v519 = vadd.f32 %v406, %v486
      %v520 = vadd.f32 %v407, %v488
      %v521 = vadd.f32 %v408, %v491
      %v522 = vadd.f32 %v409, %v493
      %v523 = vadd.f32 %v410, %v496
      %v524 = vadd.f32 %v411, %v498
      %v525 = vadd.f32 %v412, %v501
      %v526 = vadd.f32 %v413, %v503
      %v527 = vadd.f32 %v414, %v506
      %v528 = vadd.f32 %v415, %v508
      %v529 = vadd.f32 %v416, %v511
      %v530 = vadd.f32 %v417, %v513
      %531 = vst [vmem:[%s315] sm:$0xff] %v515
      %532 = vst [vmem:[%s315 + $0x8] sm:$0xff] %v516
      %533 = vst [vmem:[%s315 + $0x10] sm:$0xff] %v517
      %534 = vst [vmem:[%s315 + $0x18] sm:$0xff] %v518
      %535 = vst [vmem:[%s315 + $0x20] sm:$0xff] %v519
      %536 = vst [vmem:[%s315 + $0x28] sm:$0xff] %v520
      %537 = vst [vmem:[%s315 + $0x30] sm:$0xff] %v521
      %538 = vst [vmem:[%s315 + $0x38] sm:$0xff] %v522
      %539 = vst [vmem:[%s315 + $0x40] sm:$0xff] %v523
      %540 = vst [vmem:[%s315 + $0x48] sm:$0xff] %v524
      %541 = vst [vmem:[%s315 + $0x50] sm:$0xff] %v525
      %542 = vst [vmem:[%s315 + $0x58] sm:$0xff] %v526
      %543 = vst [vmem:[%s315 + $0x60] sm:$0xff] %v527
      %544 = vst [vmem:[%s315 + $0x68] sm:$0xff] %v528
      %545 = vst [vmem:[%s315 + $0x70] sm:$0xff] %v529
      %546 = vst [vmem:[%s315 + $0x78] sm:$0xff] %v530
      // Predicated region
      $region45: #{device_fwd.3} parent=39 // pred_check
        %p547 = pneg %p317
      $region46: #{device_fwd.3} parent=39 // pred_check_branch
        %549 = sbr.rel (%p547) target = $region48
      $region47: #{device_fwd.3} parent=39 // pred_region
        %v550 = vld [vmem:[%s315] sm:$0xff]
        %v551 = vld [vmem:[%s315 + $0x8] sm:$0xff]
        %v552 = vld [vmem:[%s315 + $0x10] sm:$0xff]
        %v553 = vld [vmem:[%s315 + $0x18] sm:$0xff]
        %v554 = vld [vmem:[%s315 + $0x20] sm:$0xff]
        %v555 = vld [vmem:[%s315 + $0x28] sm:$0xff]
        %v556 = vld [vmem:[%s315 + $0x30] sm:$0xff]
        %v557 = vld [vmem:[%s315 + $0x38] sm:$0xff]
        %v558 = vld [vmem:[%s315 + $0x40] sm:$0xff]
        %v559 = vld [vmem:[%s315 + $0x48] sm:$0xff]
        %v560 = vld [vmem:[%s315 + $0x50] sm:$0xff]
        %v561 = vld [vmem:[%s315 + $0x58] sm:$0xff]
        %v562 = vld [vmem:[%s315 + $0x60] sm:$0xff]
        %v563 = vld [vmem:[%s315 + $0x68] sm:$0xff]
        %v564 = vld [vmem:[%s315 + $0x70] sm:$0xff]
        %v565 = vld [vmem:[%s315 + $0x78] sm:$0xff]
        %v566 = vld [vmem:[%s303] sm:$0xff]
        %v567 = vld [vmem:[%s303 + $0x8] sm:$0xff]
        %v568 = vld [vmem:[%s303 + $0x10] sm:$0xff]
        %v569 = vld [vmem:[%s303 + $0x18] sm:$0xff]
        %v570 = vld [vmem:[%s303 + $0x20] sm:$0xff]
        %v571 = vld [vmem:[%s303 + $0x28] sm:$0xff]
        %v572 = vld [vmem:[%s303 + $0x30] sm:$0xff]
        %v573 = vld [vmem:[%s303 + $0x38] sm:$0xff]
        %v574 = vld [vmem:[%s303 + $0x40] sm:$0xff]
        %v575 = vld [vmem:[%s303 + $0x48] sm:$0xff]
        %v576 = vld [vmem:[%s303 + $0x50] sm:$0xff]
        %v577 = vld [vmem:[%s303 + $0x58] sm:$0xff]
        %v578 = vld [vmem:[%s303 + $0x60] sm:$0xff]
        %v579 = vld [vmem:[%s303 + $0x68] sm:$0xff]
        %v580 = vld [vmem:[%s303 + $0x70] sm:$0xff]
        %v581 = vld [vmem:[%s303 + $0x78] sm:$0xff]
        %583 = vset.pattern.permute.xlu0 0
        %584 = vperm.xlu0 %583, %v566
        %v585 = vpop.permute.xlu0 %584
        %588 = vset.pattern.permute.xlu0 0
        %589 = vperm.xlu0 %588, %v567
        %v590 = vpop.permute.xlu0 %589
        %593 = vset.pattern.permute.xlu0 0
        %594 = vperm.xlu0 %593, %v568
        %v595 = vpop.permute.xlu0 %594
        %598 = vset.pattern.permute.xlu0 0
        %599 = vperm.xlu0 %598, %v569
        %v600 = vpop.permute.xlu0 %599
        %603 = vset.pattern.permute.xlu0 0
        %604 = vperm.xlu0 %603, %v570
        %v605 = vpop.permute.xlu0 %604
        %608 = vset.pattern.permute.xlu0 0
        %609 = vperm.xlu0 %608, %v571
        %v610 = vpop.permute.xlu0 %609
        %613 = vset.pattern.permute.xlu0 0
        %614 = vperm.xlu0 %613, %v572
        %v615 = vpop.permute.xlu0 %614
        %618 = vset.pattern.permute.xlu0 0
        %619 = vperm.xlu0 %618, %v573
        %v620 = vpop.permute.xlu0 %619
        %623 = vset.pattern.permute.xlu0 0
        %624 = vperm.xlu0 %623, %v574
        %v625 = vpop.permute.xlu0 %624
        %628 = vset.pattern.permute.xlu0 0
        %629 = vperm.xlu0 %628, %v575
        %v630 = vpop.permute.xlu0 %629
        %633 = vset.pattern.permute.xlu0 0
        %634 = vperm.xlu0 %633, %v576
        %v635 = vpop.permute.xlu0 %634
        %638 = vset.pattern.permute.xlu0 0
        %639 = vperm.xlu0 %638, %v577
        %v640 = vpop.permute.xlu0 %639
        %643 = vset.pattern.permute.xlu0 0
        %644 = vperm.xlu0 %643, %v578
        %v645 = vpop.permute.xlu0 %644
        %648 = vset.pattern.permute.xlu0 0
        %649 = vperm.xlu0 %648, %v579
        %v650 = vpop.permute.xlu0 %649
        %653 = vset.pattern.permute.xlu0 0
        %654 = vperm.xlu0 %653, %v580
        %v655 = vpop.permute.xlu0 %654
        %658 = vset.pattern.permute.xlu0 0
        %659 = vperm.xlu0 %658, %v581
        %v660 = vpop.permute.xlu0 %659
        %v662 = vadd.f32 %v550, %v585
        %v663 = vadd.f32 %v551, %v590
        %v664 = vadd.f32 %v552, %v595
        %v665 = vadd.f32 %v553, %v600
        %v666 = vadd.f32 %v554, %v605
        %v667 = vadd.f32 %v555, %v610
        %v668 = vadd.f32 %v556, %v615
        %v669 = vadd.f32 %v557, %v620
        %v670 = vadd.f32 %v558, %v625
        %v671 = vadd.f32 %v559, %v630
        %v672 = vadd.f32 %v560, %v635
        %v673 = vadd.f32 %v561, %v640
        %v674 = vadd.f32 %v562, %v645
        %v675 = vadd.f32 %v563, %v650
        %v676 = vadd.f32 %v564, %v655
        %v677 = vadd.f32 %v565, %v660
        %v678 = vld [vmem:[%s297] sm:$0xff]
        %v679 = vld [vmem:[%s297 + $0x8] sm:$0xff]
        %v680 = vld [vmem:[%s297 + $0x10] sm:$0xff]
        %v681 = vld [vmem:[%s297 + $0x18] sm:$0xff]
        %v682 = vld [vmem:[%s297 + $0x20] sm:$0xff]
        %v683 = vld [vmem:[%s297 + $0x28] sm:$0xff]
        %v684 = vld [vmem:[%s297 + $0x30] sm:$0xff]
        %v685 = vld [vmem:[%s297 + $0x38] sm:$0xff]
        %v686 = vld [vmem:[%s297 + $0x40] sm:$0xff]
        %v687 = vld [vmem:[%s297 + $0x48] sm:$0xff]
        %v688 = vld [vmem:[%s297 + $0x50] sm:$0xff]
        %v689 = vld [vmem:[%s297 + $0x58] sm:$0xff]
        %v690 = vld [vmem:[%s297 + $0x60] sm:$0xff]
        %v691 = vld [vmem:[%s297 + $0x68] sm:$0xff]
        %v692 = vld [vmem:[%s297 + $0x70] sm:$0xff]
        %v693 = vld [vmem:[%s297 + $0x78] sm:$0xff]
        %v694 = vld [vmem:[%s309] sm:$0xff]
        %v695 = vld [vmem:[%s309 + $0x8] sm:$0xff]
        %v696 = vld [vmem:[%s309 + $0x10] sm:$0xff]
        %v697 = vld [vmem:[%s309 + $0x18] sm:$0xff]
        %v698 = vld [vmem:[%s309 + $0x20] sm:$0xff]
        %v699 = vld [vmem:[%s309 + $0x28] sm:$0xff]
        %v700 = vld [vmem:[%s309 + $0x30] sm:$0xff]
        %v701 = vld [vmem:[%s309 + $0x38] sm:$0xff]
        %v702 = vld [vmem:[%s309 + $0x40] sm:$0xff]
        %v703 = vld [vmem:[%s309 + $0x48] sm:$0xff]
        %v704 = vld [vmem:[%s309 + $0x50] sm:$0xff]
        %v705 = vld [vmem:[%s309 + $0x58] sm:$0xff]
        %v706 = vld [vmem:[%s309 + $0x60] sm:$0xff]
        %v707 = vld [vmem:[%s309 + $0x68] sm:$0xff]
        %v708 = vld [vmem:[%s309 + $0x70] sm:$0xff]
        %v709 = vld [vmem:[%s309 + $0x78] sm:$0xff]
        %711 = vset.pattern.permute.xlu0 0
        %712 = vperm.xlu0 %711, %v694
        %v713 = vpop.permute.xlu0 %712
        %716 = vset.pattern.permute.xlu0 0
        %717 = vperm.xlu0 %716, %v695
        %v718 = vpop.permute.xlu0 %717
        %721 = vset.pattern.permute.xlu0 0
        %722 = vperm.xlu0 %721, %v696
        %v723 = vpop.permute.xlu0 %722
        %726 = vset.pattern.permute.xlu0 0
        %727 = vperm.xlu0 %726, %v697
        %v728 = vpop.permute.xlu0 %727
        %731 = vset.pattern.permute.xlu0 0
        %732 = vperm.xlu0 %731, %v698
        %v733 = vpop.permute.xlu0 %732
        %736 = vset.pattern.permute.xlu0 0
        %737 = vperm.xlu0 %736, %v699
        %v738 = vpop.permute.xlu0 %737
        %741 = vset.pattern.permute.xlu0 0
        %742 = vperm.xlu0 %741, %v700
        %v743 = vpop.permute.xlu0 %742
        %746 = vset.pattern.permute.xlu0 0
        %747 = vperm.xlu0 %746, %v701
        %v748 = vpop.permute.xlu0 %747
        %751 = vset.pattern.permute.xlu0 0
        %752 = vperm.xlu0 %751, %v702
        %v753 = vpop.permute.xlu0 %752
        %756 = vset.pattern.permute.xlu0 0
        %757 = vperm.xlu0 %756, %v703
        %v758 = vpop.permute.xlu0 %757
        %761 = vset.pattern.permute.xlu0 0
        %762 = vperm.xlu0 %761, %v704
        %v763 = vpop.permute.xlu0 %762
        %766 = vset.pattern.permute.xlu0 0
        %767 = vperm.xlu0 %766, %v705
        %v768 = vpop.permute.xlu0 %767
        %771 = vset.pattern.permute.xlu0 0
        %772 = vperm.xlu0 %771, %v706
        %v773 = vpop.permute.xlu0 %772
        %776 = vset.pattern.permute.xlu0 0
        %777 = vperm.xlu0 %776, %v707
        %v778 = vpop.permute.xlu0 %777
        %781 = vset.pattern.permute.xlu0 0
        %782 = vperm.xlu0 %781, %v708
        %v783 = vpop.permute.xlu0 %782
        %786 = vset.pattern.permute.xlu0 0
        %787 = vperm.xlu0 %786, %v709
        %v788 = vpop.permute.xlu0 %787
        %v790 = vmul.f32 %v662, %v713
        %v791 = vmul.f32 %v663, %v718
        %v792 = vmul.f32 %v664, %v723
        %v793 = vmul.f32 %v665, %v728
        %v794 = vmul.f32 %v666, %v733
        %v795 = vmul.f32 %v667, %v738
        %v796 = vmul.f32 %v668, %v743
        %v797 = vmul.f32 %v669, %v748
        %v798 = vmul.f32 %v670, %v753
        %v799 = vmul.f32 %v671, %v758
        %v800 = vmul.f32 %v672, %v763
        %v801 = vmul.f32 %v673, %v768
        %v802 = vmul.f32 %v674, %v773
        %v803 = vmul.f32 %v675, %v778
        %v804 = vmul.f32 %v676, %v783
        %v805 = vmul.f32 %v677, %v788
        %v806 = vsub.f32 1.0, %v790
        %v807 = vsub.f32 1.0, %v791
        %v808 = vsub.f32 1.0, %v792
        %v809 = vsub.f32 1.0, %v793
        %v810 = vsub.f32 1.0, %v794
        %v811 = vsub.f32 1.0, %v795
        %v812 = vsub.f32 1.0, %v796
        %v813 = vsub.f32 1.0, %v797
        %v814 = vsub.f32 1.0, %v798
        %v815 = vsub.f32 1.0, %v799
        %v816 = vsub.f32 1.0, %v800
        %v817 = vsub.f32 1.0, %v801
        %v818 = vsub.f32 1.0, %v802
        %v819 = vsub.f32 1.0, %v803
        %v820 = vsub.f32 1.0, %v804
        %v821 = vsub.f32 1.0, %v805
        %v822 = vmul.f32 %v678, %v806
        %v823 = vmul.f32 %v679, %v807
        %v824 = vmul.f32 %v680, %v808
        %v825 = vmul.f32 %v681, %v809
        %v826 = vmul.f32 %v682, %v810
        %v827 = vmul.f32 %v683, %v811
        %v828 = vmul.f32 %v684, %v812
        %v829 = vmul.f32 %v685, %v813
        %v830 = vmul.f32 %v686, %v814
        %v831 = vmul.f32 %v687, %v815
        %v832 = vmul.f32 %v688, %v816
        %v833 = vmul.f32 %v689, %v817
        %v834 = vmul.f32 %v690, %v818
        %v835 = vmul.f32 %v691, %v819
        %v836 = vmul.f32 %v692, %v820
        %v837 = vmul.f32 %v693, %v821
        %838 = vst [vmem:[%s315] sm:$0xff] %v822
        %839 = vst [vmem:[%s315 + $0x8] sm:$0xff] %v823
        %840 = vst [vmem:[%s315 + $0x10] sm:$0xff] %v824
        %841 = vst [vmem:[%s315 + $0x18] sm:$0xff] %v825
        %842 = vst [vmem:[%s315 + $0x20] sm:$0xff] %v826
        %843 = vst [vmem:[%s315 + $0x28] sm:$0xff] %v827
        %844 = vst [vmem:[%s315 + $0x30] sm:$0xff] %v828
        %845 = vst [vmem:[%s315 + $0x38] sm:$0xff] %v829
        %846 = vst [vmem:[%s315 + $0x40] sm:$0xff] %v830
        %847 = vst [vmem:[%s315 + $0x48] sm:$0xff] %v831
        %848 = vst [vmem:[%s315 + $0x50] sm:$0xff] %v832
        %849 = vst [vmem:[%s315 + $0x58] sm:$0xff] %v833
        %850 = vst [vmem:[%s315 + $0x60] sm:$0xff] %v834
        %851 = vst [vmem:[%s315 + $0x68] sm:$0xff] %v835
        %852 = vst [vmem:[%s315 + $0x70] sm:$0xff] %v836
        %853 = vst [vmem:[%s315 + $0x78] sm:$0xff] %v837
      $region48: #{device_fwd.3} parent=39 // pred_fallthru
        _
      %s854 = smul.u32 16, %s20
      %p855 = scmp.lt.s32.totalorder %s854, 31
      %s856 = scalar_select %p855, %s854, 31
      %s857 = smul.addr %s856, 8
      %s858 = scalar_lea.vmem %s5, %s857
      // Predicated region
      $region49: #{device_fwd.3} parent=39 // pred_check
        %p859 = pneg %p173
      $region50: #{device_fwd.3} parent=39 // pred_check_branch
        %861 = sbr.rel (%p859) target = $region52
      $region51: #{device_fwd.3} parent=39 // pred_region
        %s862 = smul.u32 16, %s20
      $region52: #{device_fwd.3} parent=39 // pred_fallthru
        _
    $region40: #{device_fwd.3} parent=5 // pred_fallthru
      _
    %p863 = scmp.le.s32.totalorder 2, %s11
    // Predicated region
    $region53: #{device_fwd.3} parent=5 // pred_check
      %p864 = pneg %p863
    $region54: #{device_fwd.3} parent=5 // pred_check_branch
      %866 = sbr.rel (%p864) target = $region56
    $region55: #{device_fwd.3} parent=5 // pred_region
      %s867 = ssub.s32 %s11, 2
      // Predicated region
      $region57: #{device_fwd.3} parent=55 // pred_check
        %p868 = pneg %p179
      $region58: #{device_fwd.3} parent=55 // pred_check_branch
        %870 = sbr.rel (%p868) target = $region60
      $region59: #{device_fwd.3} parent=55 // pred_region
        %s871 = smul.u32 16, %s22
        %p872 = scmp.lt.s32.totalorder %s871, 31
        %s873 = scalar_select %p872, %s871, 31
        %s874 = smul.addr %s873, 8
        %s875 = scalar_lea.vmem %s5, %s874
      $region60: #{device_fwd.3} parent=55 // pred_fallthru
        _
    $region56: #{device_fwd.3} parent=5 // pred_fallthru
      _
  $region6: #{device_fwd.3} parent=0 // loop_footer
    %s15 = sadd.s32 1, %s11
  $region7: #{device_fwd.3} parent=0 // loop_footer_branch
    %10 = sbr.rel target = $region3
  $region8: #{device_fwd.3} parent=0 // loop_exit
    _

// kernel: device_fwd.2
$region0: #{device_fwd.2}
  #allocation0 [shape = 'u32[]', space=smem, size = 0x4, offset = 0x4, fixed_abs, tag = 'smem constant byte address 0x4 - core index']
  #allocation1 [shape = 'u32[72,128]{1,0:T(1,128)}', space=vmem, size = 0x9000, scoped, tag = 'internal scratch']
  %s0 = inlined_call_operand.vmem [shape: s8[128,256], index: 0, kind: input, shape index: {}]
  %s1 = inlined_call_operand.vmem [shape: bf16[256,128], index: 1, kind: input, shape index: {}]
  %s2 = inlined_call_operand.vmem [shape: f32[128,128], index: 2, kind: input, shape index: {}]
  %s3 = inlined_call_operand.vmem [shape: f32[128,1], index: 3, kind: input, shape index: {}]
  %s4 = inlined_call_operand.vmem [shape: f32[128,128], index: 4, kind: output, shape index: {0}]
  %s5 = inlined_call_operand.vmem [shape: bf16[128,128], index: 5, kind: output, shape index: {1}]
  %6 = xla_tuple %s4, %s5
  %s7 = sld [smem:[#allocation0]]
  $region103: #{device_fwd.2} parent=0
    _
  %s9 = ssub.s32 1, %s7
  %s10 = scalar_select 0, %s9, %s7
  $region1: #{device_fwd.2} parent=0
    #allocation2 [shape = 'u8[32768]{0}', space=vmem, size = 0x8000, scoped, tag = 'input window, operand 0']
    loop: start=0, step=1, limit=4
    $region2: #{device_fwd.2} parent=1 // loop_pre_header
      _
    $region3: #{device_fwd.2} parent=1 // loop_header
      %s12 = sphi 0, %s16
      %p13 = scmp.ge.s32.totalorder %s12, 4
      %s19 = sphi 0, %s31
      %s20 = sphi 0, %s27
      %s21 = sphi 0, %s19
      %s22 = sphi 0, %s20
      %s23 = sphi 0, %s21
      %s24 = sphi 0, %s22
      %s36 = sphi 0, %s38
      %s39 = sphi 0, %s36
      %s40 = sphi 0, %s39
      %s56 = sphi 0, %s40
      %s60 = sphi 0, %s60
      %s62 = sphi 0, %s60
      %s63 = sphi 0, %s62
      %s77 = sphi 0, %s63
      %s83 = sphi 0, %s85
      %s86 = sphi 0, %s83
      %s87 = sphi 0, %s86
      %s103 = sphi 0, %s87
      %s109 = sphi 0, %s111
      %s112 = sphi 0, %s109
      %s113 = sphi 0, %s112
      %s129 = sphi 0, %s113
      %s135 = sphi 0, %s137
      %s138 = sphi 0, %s135
      %s139 = sphi 0, %s138
      %s155 = sphi 0, %s139
      %s161 = sphi 0, %s163
      %s164 = sphi 0, %s161
      %s165 = sphi 0, %s164
      %s181 = sphi 0, %s165
    $region4: #{device_fwd.2} parent=1 // loop_header_branch
      %15 = sbr.rel (%p13) target = $region8
    $region5: #{device_fwd.2} parent=1 // loop_body
      %s17 = ssub.s32 %s12, 1
      %s18 = ssub.s32 %s12, 2
      %s25 = sadd.s32 1, %s20
      %p26 = scmp.ge.s32.totalorder %s25, 2
      %s27 = scalar_select %p26, 0, %s25
      %s28 = sadd.s32 1, %s19
      %s29 = scalar_select %p26, %s28, %s19
      %p30 = scmp.ge.s32.totalorder %s29, 1
      %s31 = scalar_select %p30, 0, %s29
      %s32 = ssub.s32 %s19, %s31
      %s33 = ssub.s32 %s20, %s27
      %s34 = sor.u32 %s32, %s33
      %p35 = scmp.eq.s32.totalorder %s34, 0
      %s37 = sadd.s32 %s36, 1
      %s38 = scalar_select %p35, %s36, %s37
      %p41 = pneg %p35
      %p42 = scmp.eq.s32.totalorder %s12, 1
      %p43 = por %p41, %p42
      %p44 = scmp.ne.s32.totalorder %s36, %s39
      %p45 = scmp.eq.s32.totalorder %s12, 0
      %p46 = por %p44, %p45
      %p47 = scmp.ne.s32.totalorder %s36, %s39
      %p48 = scmp.eq.s32.totalorder %s17, 1
      %p49 = por %p47, %p48
      %p50 = scmp.ne.s32.totalorder %s39, %s40
      %p51 = scmp.eq.s32.totalorder %s17, 0
      %p52 = por %p50, %p51
      %p53 = scmp.ne.s32.totalorder %s39, %s40
      %p54 = scmp.eq.s32.totalorder %s18, 1
      %p55 = por %p53, %p54
      %p57 = scmp.ne.s32.totalorder %s40, %s56
      %p58 = scmp.eq.s32.totalorder %s18, 0
      %p59 = por %p57, %p58
      %s61 = sadd.s32 %s60, 1
      %p64 = scmp.eq.s32.totalorder %s12, 1
      %p65 = scmp.ne.s32.totalorder %s60, %s62
      %p66 = scmp.eq.s32.totalorder %s12, 0
      %p67 = por %p65, %p66
      %p68 = scmp.ne.s32.totalorder %s60, %s62
      %p69 = scmp.eq.s32.totalorder %s17, 1
      %p70 = por %p68, %p69
      %p71 = scmp.ne.s32.totalorder %s62, %s63
      %p72 = scmp.eq.s32.totalorder %s17, 0
      %p73 = por %p71, %p72
      %p74 = scmp.ne.s32.totalorder %s62, %s63
      %p75 = scmp.eq.s32.totalorder %s18, 1
      %p76 = por %p74, %p75
      %p78 = scmp.ne.s32.totalorder %s63, %s77
      %p79 = scmp.eq.s32.totalorder %s18, 0
      %p80 = por %p78, %p79
      %s81 = ssub.s32 %s19, %s31
      %p82 = scmp.eq.s32.totalorder %s81, 0
      %s84 = sadd.s32 %s83, 1
      %s85 = scalar_select %p82, %s83, %s84
      %p88 = pneg %p82
      %p89 = scmp.eq.s32.totalorder %s12, 1
      %p90 = por %p88, %p89
      %p91 = scmp.ne.s32.totalorder %s83, %s86
      %p92 = scmp.eq.s32.totalorder %s12, 0
      %p93 = por %p91, %p92
      %p94 = scmp.ne.s32.totalorder %s83, %s86
      %p95 = scmp.eq.s32.totalorder %s17, 1
      %p96 = por %p94, %p95
      %p97 = scmp.ne.s32.totalorder %s86, %s87
      %p98 = scmp.eq.s32.totalorder %s17, 0
      %p99 = por %p97, %p98
      %p100 = scmp.ne.s32.totalorder %s86, %s87
      %p101 = scmp.eq.s32.totalorder %s18, 1
      %p102 = por %p100, %p101
      %p104 = scmp.ne.s32.totalorder %s87, %s103
      %p105 = scmp.eq.s32.totalorder %s18, 0
      %p106 = por %p104, %p105
      %s107 = ssub.s32 %s19, %s31
      %p108 = scmp.eq.s32.totalorder %s107, 0
      %s110 = sadd.s32 %s109, 1
      %s111 = scalar_select %p108, %s109, %s110
      %p114 = pneg %p108
      %p115 = scmp.eq.s32.totalorder %s12, 1
      %p116 = por %p114, %p115
      %p117 = scmp.ne.s32.totalorder %s109, %s112
      %p118 = scmp.eq.s32.totalorder %s12, 0
      %p119 = por %p117, %p118
      %p120 = scmp.ne.s32.totalorder %s109, %s112
      %p121 = scmp.eq.s32.totalorder %s17, 1
      %p122 = por %p120, %p121
      %p123 = scmp.ne.s32.totalorder %s112, %s113
      %p124 = scmp.eq.s32.totalorder %s17, 0
      %p125 = por %p123, %p124
      %p126 = scmp.ne.s32.totalorder %s112, %s113
      %p127 = scmp.eq.s32.totalorder %s18, 1
      %p128 = por %p126, %p127
      %p130 = scmp.ne.s32.totalorder %s113, %s129
      %p131 = scmp.eq.s32.totalorder %s18, 0
      %p132 = por %p130, %p131
      %s133 = ssub.s32 %s19, %s31
      %p134 = scmp.eq.s32.totalorder %s133, 0
      %s136 = sadd.s32 %s135, 1
      %s137 = scalar_select %p134, %s135, %s136
      %p140 = pneg %p134
      %p141 = scmp.eq.s32.totalorder %s12, 1
      %p142 = por %p140, %p141
      %p143 = scmp.ne.s32.totalorder %s135, %s138
      %p144 = scmp.eq.s32.totalorder %s12, 0
      %p145 = por %p143, %p144
      %p146 = scmp.ne.s32.totalorder %s135, %s138
      %p147 = scmp.eq.s32.totalorder %s17, 1
      %p148 = por %p146, %p147
      %p149 = scmp.ne.s32.totalorder %s138, %s139
      %p150 = scmp.eq.s32.totalorder %s17, 0
      %p151 = por %p149, %p150
      %p152 = scmp.ne.s32.totalorder %s138, %s139
      %p153 = scmp.eq.s32.totalorder %s18, 1
      %p154 = por %p152, %p153
      %p156 = scmp.ne.s32.totalorder %s139, %s155
      %p157 = scmp.eq.s32.totalorder %s18, 0
      %p158 = por %p156, %p157
      %s159 = ssub.s32 %s19, %s31
      %p160 = scmp.eq.s32.totalorder %s159, 0
      %s162 = sadd.s32 %s161, 1
      %s163 = scalar_select %p160, %s161, %s162
      %p166 = pneg %p160
      %p167 = scmp.eq.s32.totalorder %s12, 1
      %p168 = por %p166, %p167
      %p169 = scmp.ne.s32.totalorder %s161, %s164
      %p170 = scmp.eq.s32.totalorder %s12, 0
      %p171 = por %p169, %p170
      %p172 = scmp.ne.s32.totalorder %s161, %s164
      %p173 = scmp.eq.s32.totalorder %s17, 1
      %p174 = por %p172, %p173
      %p175 = scmp.ne.s32.totalorder %s164, %s165
      %p176 = scmp.eq.s32.totalorder %s17, 0
      %p177 = por %p175, %p176
      %p178 = scmp.ne.s32.totalorder %s164, %s165
      %p179 = scmp.eq.s32.totalorder %s18, 1
      %p180 = por %p178, %p179
      %p182 = scmp.ne.s32.totalorder %s165, %s181
      %p183 = scmp.eq.s32.totalorder %s18, 0
      %p184 = por %p182, %p183
      %p185 = scmp.le.s32.totalorder 1, %s12
      %p186 = scmp.lt.s32.totalorder %s12, 3
      %p187 = pnand %p185, %p186
      %p188 = pneg %p187
      // Predicated region
      $region9: #{device_fwd.2} parent=5 // pred_check
        _
      $region10: #{device_fwd.2} parent=5 // pred_check_branch
        %190 = sbr.rel (%p187) target = $region12
      $region11: #{device_fwd.2} parent=5 // pred_region
        %s191 = ssub.s32 %s12, 1
        // Predicated region
        $region13: #{device_fwd.2} parent=11 // pred_check
          %p192 = pneg %p73
        $region14: #{device_fwd.2} parent=11 // pred_check_branch
          %194 = sbr.rel (%p192) target = $region16
        $region15: #{device_fwd.2} parent=11 // pred_region
          _
        $region16: #{device_fwd.2} parent=11 // pred_fallthru
          _
        // Predicated region
        $region17: #{device_fwd.2} parent=11 // pred_check
          %p195 = pneg %p99
        $region18: #{device_fwd.2} parent=11 // pred_check_branch
          %197 = sbr.rel (%p195) target = $region20
        $region19: #{device_fwd.2} parent=11 // pred_region
          %s198 = smul.u32 16, %s21
          %p199 = scmp.lt.s32.totalorder %s198, 15
          %s200 = scalar_select %p199, %s198, 15
          %s201 = smul.addr %s200, 8
          %s202 = scalar_lea.vmem %s2, %s201
          %s203 = smul.u32 16, %s21
        $region20: #{device_fwd.2} parent=11 // pred_fallthru
          _
        // Predicated region
        $region21: #{device_fwd.2} parent=11 // pred_check
          %p204 = pneg %p125
        $region22: #{device_fwd.2} parent=11 // pred_check_branch
          %206 = sbr.rel (%p204) target = $region24
        $region23: #{device_fwd.2} parent=11 // pred_region
          %s207 = smul.u32 16, %s21
          %p208 = scmp.lt.s32.totalorder %s207, 15
          %s209 = scalar_select %p208, %s207, 15
          %s210 = smul.addr %s209, 8
          %s211 = scalar_lea.vmem %s3, %s210
          %s212 = smul.u32 16, %s21
        $region24: #{device_fwd.2} parent=11 // pred_fallthru
          _
      $region12: #{device_fwd.2} parent=5 // pred_fallthru
        _
      %p213 = scmp.lt.s32.totalorder %s12, 2
      // Predicated region
      $region25: #{device_fwd.2} parent=5 // pred_check
        %p214 = pneg %p213
      $region26: #{device_fwd.2} parent=5 // pred_check_branch
        %216 = sbr.rel (%p214) target = $region28
      $region27: #{device_fwd.2} parent=5 // pred_region
        // Predicated region
        $region29: #{device_fwd.2} parent=27 // pred_check
          %p217 = pneg %p46
        $region30: #{device_fwd.2} parent=27 // pred_check_branch
          %219 = sbr.rel (%p217) target = $region32
        $region31: #{device_fwd.2} parent=27 // pred_region
          %s220 = sand.u32 %s36, 1
          %s221 = sand.u32 %s36, 1
          %s222 = smul.addr %s221, 32
          %s223 = scalar_lea.vmem [#allocation2], %s222
          %s224 = smul.u32 4, %s19
          %s225 = smul.addr %s224, 2
          %s226 = sadd.s32 %s20, %s225
          %s227 = smul.addr %s226, 8
          %s228 = scalar_lea.vmem %s0, %s227
          // Predicated region
          $region33: #{device_fwd.2} parent=31 // pred_check
            _
          $region34: #{device_fwd.2} parent=31 // pred_check_branch
            %230 = sbr.rel (0) target = $region36
          $region35: #{device_fwd.2} parent=31 // pred_region
            // Predicated region
            $region37: #{device_fwd.2} parent=35 // pred_check
              _
            $region38: #{device_fwd.2} parent=35 // pred_check_branch
              %232 = sbr.rel (0) target = $region40
            $region39: #{device_fwd.2} parent=35 // pred_region
              // Predicated region
              $region52: #{device_fwd.2} parent=39 // pred_check
                _
              $region53: #{device_fwd.2} parent=39 // pred_check_branch
                %254 = sbr.rel (0) target = $region55
              $region54: #{device_fwd.2} parent=39 // pred_region
                loop: start=0, step=1, limit=1
                $region56: #{device_fwd.2} parent=54 // loop_pre_header
                  _
                $region57: #{device_fwd.2} parent=54 // loop_header
                  %s256 = sphi 0, %s260
                  %p257 = scmp.ge.s32.totalorder %s256, 1
                  %s261 = sphi %s228, %s228
                  %s262 = sphi %s223, %s223
                $region58: #{device_fwd.2} parent=54 // loop_header_branch
                  %259 = sbr.rel (%p257) target = $region62
                $region59: #{device_fwd.2} parent=54 // loop_body
                  %v263 = vld [vmem:[%s261] sm:$0xff]
                  %264 = vst [vmem:[%s262] sm:$0xff] %v263
                  %v265 = vld [vmem:[%s261 + $0x10] sm:$0xff]
                  %266 = vst [vmem:[%s262 + $0x8] sm:$0xff] %v265
                  %v267 = vld [vmem:[%s261 + $0x20] sm:$0xff]
                  %268 = vst [vmem:[%s262 + $0x10] sm:$0xff] %v267
                  %v269 = vld [vmem:[%s261 + $0x30] sm:$0xff]
                  %270 = vst [vmem:[%s262 + $0x18] sm:$0xff] %v269
                $region60: #{device_fwd.2} parent=54 // loop_footer
                  %s260 = sadd.s32 1, %s256
                $region61: #{device_fwd.2} parent=54 // loop_footer_branch
                  %255 = sbr.rel target = $region57
                $region62: #{device_fwd.2} parent=54 // loop_exit
                  _
              $region55: #{device_fwd.2} parent=39 // pred_fallthru
                _
              // Predicated region
              $region63: #{device_fwd.2} parent=39 // pred_check
                _
              $region64: #{device_fwd.2} parent=39 // pred_check_branch
                %272 = sbr.rel target = $region66
              $region65: #{device_fwd.2} parent=39 // pred_region
                _
              $region66: #{device_fwd.2} parent=39 // pred_fallthru
                _
            $region40: #{device_fwd.2} parent=35 // pred_fallthru
              _
            // Predicated region
            $region41: #{device_fwd.2} parent=35 // pred_check
              _
            $region42: #{device_fwd.2} parent=35 // pred_check_branch
              %234 = sbr.rel target = $region44
            $region43: #{device_fwd.2} parent=35 // pred_region
              %s236 = ssub.s32 256, 1
              loop: start=0, step=1, limit=1
              $region45: #{device_fwd.2} parent=43 // loop_pre_header
                _
              $region46: #{device_fwd.2} parent=43 // loop_header
                %s238 = sphi 0, %s242
                %p239 = scmp.ge.s32.totalorder %s238, 1
                %s243 = sphi %s228, %s228
                %s244 = sphi %s223, %s223
              $region47: #{device_fwd.2} parent=43 // loop_header_branch
                %241 = sbr.rel (%p239) target = $region51
              $region48: #{device_fwd.2} parent=43 // loop_body
                %v245 = vld [vmem:[%s243] sm:%s236]
                %246 = vst [vmem:[%s244] sm:%s236] %v245
                %v247 = vld [vmem:[%s243 + $0x10] sm:%s236]
                %248 = vst [vmem:[%s244 + $0x8] sm:%s236] %v247
                %v249 = vld [vmem:[%s243 + $0x20] sm:%s236]
                %250 = vst [vmem:[%s244 + $0x10] sm:%s236] %v249
                %v251 = vld [vmem:[%s243 + $0x30] sm:%s236]
                %252 = vst [vmem:[%s244 + $0x18] sm:%s236] %v251
              $region49: #{device_fwd.2} parent=43 // loop_footer
                %s242 = sadd.s32 1, %s238
              $region50: #{device_fwd.2} parent=43 // loop_footer_branch
                %237 = sbr.rel target = $region46
              $region51: #{device_fwd.2} parent=43 // loop_exit
                _
            $region44: #{device_fwd.2} parent=35 // pred_fallthru
              _
          $region36: #{device_fwd.2} parent=31 // pred_fallthru
            _
          %273 = vnop
        $region32: #{device_fwd.2} parent=27 // pred_fallthru
          _
      $region28: #{device_fwd.2} parent=5 // pred_fallthru
        _
      %p274 = scmp.le.s32.totalorder 1, %s12
      %p275 = scmp.lt.s32.totalorder %s12, 3
      %p276 = pnand %p274, %p275
      %p277 = pneg %p276
      // Predicated region
      $region67: #{device_fwd.2} parent=5 // pred_check
        _
      $region68: #{device_fwd.2} parent=5 // pred_check_branch
        %279 = sbr.rel (%p276) target = $region70
      $region69: #{device_fwd.2} parent=5 // pred_region
        %s280 = ssub.s32 %s12, 1
        %s281 = sand.u32 %s39, 1
        %s282 = sand.u32 %s39, 1
        %s283 = smul.addr %s282, 32
        %s284 = scalar_lea.vmem [#allocation2], %s283
        // Predicated region
        $region71: #{device_fwd.2} parent=69 // pred_check
          %p285 = pneg %p52
        $region72: #{device_fwd.2} parent=69 // pred_check_branch
          %287 = sbr.rel (%p285) target = $region74
        $region73: #{device_fwd.2} parent=69 // pred_region
          _
        $region74: #{device_fwd.2} parent=69 // pred_fallthru
          _
        %s288 = sand.u32 %s39, 1
        %s289 = sand.u32 %s39, 1
        %s290 = smul.addr %s289, 32
        %s291 = scalar_lea.vmem [#allocation2], %s290
        %p292 = pneg %p52
        %p293 = pneg %p49
        %p294 = pneg %p73
        %p295 = pneg %p70
        %s296 = smul.u32 16, %s21
        %p297 = scmp.lt.s32.totalorder %s296, 15
        %s298 = scalar_select %p297, %s296, 15
        %s299 = smul.addr %s298, 8
        %s300 = scalar_lea.vmem %s2, %s299
        %p301 = pneg %p99
        %p302 = pneg %p96
        %s303 = smul.u32 16, %s21
        %p304 = scmp.lt.s32.totalorder %s303, 15
        %s305 = scalar_select %p304, %s303, 15
        %s306 = smul.addr %s305, 8
        %s307 = scalar_lea.vmem %s3, %s306
        %p308 = pneg %p125
        %p309 = pneg %p122
        %p310 = pneg %p151
        %p311 = pneg %p148
        %s312 = smul.u32 16, %s21
        %p313 = scmp.lt.s32.totalorder %s312, 15
        %s314 = scalar_select %p313, %s312, 15
        %s315 = smul.addr %s314, 8
        %s316 = scalar_lea.vmem %s4, %s315
        %p317 = pneg %p177
        %p318 = pneg %p174
        %s319 = smul.u32 16, %s21
        %p320 = scmp.lt.s32.totalorder %s319, 15
        %s321 = scalar_select %p320, %s319, 15
        %s322 = smul.addr %s321, 4
        %s323 = scalar_lea.vmem %s5, %s322
        %s324 = smul.u32 4, %s21
        %s325 = smul.u32 16, %s21
        %p326 = scmp.lt.s32.totalorder %s325, 15
        %s327 = scalar_select %p326, %s325, 15
        %s328 = smul.addr %s327, 8
        %s329 = scalar_lea.vmem %s2, %s328
        %s330 = smul.u32 16, %s21
        %s331 = smul.u32 16, %s21
        %p332 = scmp.lt.s32.totalorder %s331, 15
        %s333 = scalar_select %p332, %s331, 15
        %s334 = smul.addr %s333, 8
        %s335 = scalar_lea.vmem %s3, %s334
        %s336 = smul.u32 16, %s21
        %s337 = smul.u32 16, %s21
        %p338 = scmp.lt.s32.totalorder %s337, 15
        %s339 = scalar_select %p338, %s337, 15
        %s340 = smul.addr %s339, 8
        %s341 = scalar_lea.vmem %s4, %s340
        %s342 = smul.u32 16, %s21
        %s343 = smul.u32 16, %s21
        %p344 = scmp.lt.s32.totalorder %s343, 15
        %s345 = scalar_select %p344, %s343, 15
        %s346 = smul.addr %s345, 4
        %s347 = scalar_lea.vmem %s5, %s346
        %s348 = smul.u32 16, %s21
        %p349 = scmp.eq.s32.totalorder %s22, 0
        // Predicated region
        $region75: #{device_fwd.2} parent=69 // pred_check
          %p350 = pneg %p349
        $region76: #{device_fwd.2} parent=69 // pred_check_branch
          %352 = sbr.rel (%p350) target = $region78
        $region77: #{device_fwd.2} parent=69 // pred_region
          %353 = vst [vmem:[%s341] sm:$0xff] 0.0
          %354 = vst [vmem:[%s341 + $0x8] sm:$0xff] 0.0
          %355 = vst [vmem:[%s341 + $0x10] sm:$0xff] 0.0
          %356 = vst [vmem:[%s341 + $0x18] sm:$0xff] 0.0
          %357 = vst [vmem:[%s341 + $0x20] sm:$0xff] 0.0
          %358 = vst [vmem:[%s341 + $0x28] sm:$0xff] 0.0
          %359 = vst [vmem:[%s341 + $0x30] sm:$0xff] 0.0
          %360 = vst [vmem:[%s341 + $0x38] sm:$0xff] 0.0
          %361 = vst [vmem:[%s341 + $0x40] sm:$0xff] 0.0
          %362 = vst [vmem:[%s341 + $0x48] sm:$0xff] 0.0
          %363 = vst [vmem:[%s341 + $0x50] sm:$0xff] 0.0
          %364 = vst [vmem:[%s341 + $0x58] sm:$0xff] 0.0
          %365 = vst [vmem:[%s341 + $0x60] sm:$0xff] 0.0
          %366 = vst [vmem:[%s341 + $0x68] sm:$0xff] 0.0
          %367 = vst [vmem:[%s341 + $0x70] sm:$0xff] 0.0
          %368 = vst [vmem:[%s341 + $0x78] sm:$0xff] 0.0
        $region78: #{device_fwd.2} parent=69 // pred_fallthru
          _
        %v369 = vld [vmem:[%s284] sm:$0xff]
        %v370 = vld [vmem:[%s284 + $0x8] sm:$0xff]
        %v371 = vld [vmem:[%s284 + $0x10] sm:$0xff]
        %v372 = vld [vmem:[%s284 + $0x18] sm:$0xff]
        %v373 = vunpack.c.0.s8 %v369
        %v374 = vunpack.c.1.s8 %v369
        %v375 = vunpack.c.2.s8 %v369
        %v376 = vunpack.c.3.s8 %v369
        %v377 = vunpack.c.0.s8 %v370
        %v378 = vunpack.c.1.s8 %v370
        %v379 = vunpack.c.2.s8 %v370
        %v380 = vunpack.c.3.s8 %v370
        %v381 = vunpack.c.0.s8 %v371
        %v382 = vunpack.c.1.s8 %v371
        %v383 = vunpack.c.2.s8 %v371
        %v384 = vunpack.c.3.s8 %v371
        %v385 = vunpack.c.0.s8 %v372
        %v386 = vunpack.c.1.s8 %v372
        %v387 = vunpack.c.2.s8 %v372
        %v388 = vunpack.c.3.s8 %v372
        %v389 = vcvt.s32.f32 %v373
        %v390 = vcvt.s32.f32 %v374
        %v391 = vcvt.s32.f32 %v375
        %v392 = vcvt.s32.f32 %v376
        %v393 = vcvt.s32.f32 %v377
        %v394 = vcvt.s32.f32 %v378
        %v395 = vcvt.s32.f32 %v379
        %v396 = vcvt.s32.f32 %v380
        %v397 = vcvt.s32.f32 %v381
        %v398 = vcvt.s32.f32 %v382
        %v399 = vcvt.s32.f32 %v383
        %v400 = vcvt.s32.f32 %v384
        %v401 = vcvt.s32.f32 %v385
        %v402 = vcvt.s32.f32 %v386
        %v403 = vcvt.s32.f32 %v387
        %v404 = vcvt.s32.f32 %v388
        %v405 = vpack.c.bf16 %v390, %v389
        %v406 = vpack.c.bf16 %v392, %v391
        %v407 = vpack.c.bf16 %v394, %v393
        %v408 = vpack.c.bf16 %v396, %v395
        %v409 = vpack.c.bf16 %v398, %v397
        %v410 = vpack.c.bf16 %v400, %v399
        %v411 = vpack.c.bf16 %v402, %v401
        %v412 = vpack.c.bf16 %v404, %v403
        %s413 = smul.u32 %s22, 128
        %s414 = sshra.s32 %s413, 3
        %s415 = sand.u32 %s413, 7
        %s416 = smul.addr %s414, 4
        %s417 = scalar_lea.vmem %s1, %s416
        %v418 = vld [vmem:[%s417] sm:$0xf]
        %v419 = vld [vmem:[%s417 + $0x4] sm:$0xf]
        %v420 = vld [vmem:[%s417 + $0x8] sm:$0xf]
        %v421 = vld [vmem:[%s417 + $0xc] sm:$0xf]
        %v422 = vld [vmem:[%s417 + $0x10] sm:$0xf]
        %v423 = vld [vmem:[%s417 + $0x14] sm:$0xf]
        %v424 = vld [vmem:[%s417 + $0x18] sm:$0xf]
        %v425 = vld [vmem:[%s417 + $0x1c] sm:$0xf]
        %v426 = vld [vmem:[%s417 + $0x20] sm:$0xf]
        %v427 = vld [vmem:[%s417 + $0x24] sm:$0xf]
        %v428 = vld [vmem:[%s417 + $0x28] sm:$0xf]
        %v429 = vld [vmem:[%s417 + $0x2c] sm:$0xf]
        %v430 = vld [vmem:[%s417 + $0x30] sm:$0xf]
        %v431 = vld [vmem:[%s417 + $0x34] sm:$0xf]
        %v432 = vld [vmem:[%s417 + $0x38] sm:$0xf]
        %v433 = vld [vmem:[%s417 + $0x3c] sm:$0xf]
        %v434 = vld [vmem:[%s341] sm:$0xff]
        %v435 = vld [vmem:[%s341 + $0x8] sm:$0xff]
        %v436 = vld [vmem:[%s341 + $0x10] sm:$0xff]
        %v437 = vld [vmem:[%s341 + $0x18] sm:$0xff]
        %v438 = vld [vmem:[%s341 + $0x20] sm:$0xff]
        %v439 = vld [vmem:[%s341 + $0x28] sm:$0xff]
        %v440 = vld [vmem:[%s341 + $0x30] sm:$0xff]
        %v441 = vld [vmem:[%s341 + $0x38] sm:$0xff]
        %v442 = vld [vmem:[%s341 + $0x40] sm:$0xff]
        %v443 = vld [vmem:[%s341 + $0x48] sm:$0xff]
        %v444 = vld [vmem:[%s341 + $0x50] sm:$0xff]
        %v445 = vld [vmem:[%s341 + $0x58] sm:$0xff]
        %v446 = vld [vmem:[%s341 + $0x60] sm:$0xff]
        %v447 = vld [vmem:[%s341 + $0x68] sm:$0xff]
        %v448 = vld [vmem:[%s341 + $0x70] sm:$0xff]
        %v449 = vld [vmem:[%s341 + $0x78] sm:$0xff]
        %v466 = vunpack.c.l.b16 %v418
        %v467 = vunpack.c.l.b16 %v419
        %v468 = vunpack.c.l.b16 %v420
        %v469 = vunpack.c.l.b16 %v421
        %v470 = vunpack.c.l.b16 %v422
        %v471 = vunpack.c.l.b16 %v423
        %v472 = vunpack.c.l.b16 %v424
        %v473 = vunpack.c.l.b16 %v425
        %v474 = vunpack.c.l.b16 %v426
        %v475 = vunpack.c.l.b16 %v427
        %v476 = vunpack.c.l.b16 %v428
        %v477 = vunpack.c.l.b16 %v429
        %v478 = vunpack.c.l.b16 %v430
        %v479 = vunpack.c.l.b16 %v431
        %v480 = vunpack.c.l.b16 %v432
        %v481 = vunpack.c.l.b16 %v433
        %v482 = vpack.c.b16 %v467, %v466
        %v483 = vpack.c.b16 %v469, %v468
        %v484 = vpack.c.b16 %v471, %v470
        %v485 = vpack.c.b16 %v473, %v472
        %v486 = vpack.c.b16 %v475, %v474
        %v487 = vpack.c.b16 %v477, %v476
        %v488 = vpack.c.b16 %v479, %v478
        %v489 = vpack.c.b16 %v481, %v480
        %498 = vmatpush.bf16.msra.mxu0 %v489
        %499 = vmatpush.bf16.msra.mxu0 %v488
        %500 = vmatpush.bf16.msra.mxu0 %v487
        %501 = vmatpush.bf16.msra.mxu0 %v486
        %502 = vmatpush.bf16.msra.mxu0 %v485
        %503 = vmatpush.bf16.msra.mxu0 %v484
        %504 = vmatpush.bf16.msra.mxu0 %v483
        %505 = vmatpush.bf16.msra.mxu0 %v482
        %506 = vmatmul.bf16.gmra.mxu0 %v405
        %v507 = vpop.f32.mrf.mxu0
        %v508 = vadd.f32 0.0, %v507
        %v509 = vpop.f32.mrf.mxu0
        %v510 = vadd.f32 0.0, %v509
        %511 = vmatmul.bf16.gmra.mxu0 %v406
        %v512 = vpop.f32.mrf.mxu0
        %v513 = vadd.f32 0.0, %v512
        %v514 = vpop.f32.mrf.mxu0
        %v515 = vadd.f32 0.0, %v514
        %516 = vmatmul.bf16.gmra.mxu0 %v407
        %v517 = vpop.f32.mrf.mxu0
        %v518 = vadd.f32 0.0, %v517
        %v519 = vpop.f32.mrf.mxu0
        %v520 = vadd.f32 0.0, %v519
        %521 = vmatmul.bf16.gmra.mxu0 %v408
        %v522 = vpop.f32.mrf.mxu0
        %v523 = vadd.f32 0.0, %v522
        %v524 = vpop.f32.mrf.mxu0
        %v525 = vadd.f32 0.0, %v524
        %526 = vmatmul.bf16.gmra.mxu0 %v409
        %v527 = vpop.f32.mrf.mxu0
        %v528 = vadd.f32 0.0, %v527
        %v529 = vpop.f32.mrf.mxu0
        %v530 = vadd.f32 0.0, %v529
        %531 = vmatmul.bf16.gmra.mxu0 %v410
        %v532 = vpop.f32.mrf.mxu0
        %v533 = vadd.f32 0.0, %v532
        %v534 = vpop.f32.mrf.mxu0
        %v535 = vadd.f32 0.0, %v534
        %536 = vmatmul.bf16.gmra.mxu0 %v411
        %v537 = vpop.f32.mrf.mxu0
        %v538 = vadd.f32 0.0, %v537
        %v539 = vpop.f32.mrf.mxu0
        %v540 = vadd.f32 0.0, %v539
        %541 = vmatmul.bf16.gmra.mxu0 %v412
        %v542 = vpop.f32.mrf.mxu0
        %v543 = vadd.f32 0.0, %v542
        %v544 = vpop.f32.mrf.mxu0
        %v545 = vadd.f32 0.0, %v544
        %546 = vdwg.mxu0
        %v547 = vadd.f32 %v434, %v508
        %v548 = vadd.f32 %v435, %v510
        %v549 = vadd.f32 %v436, %v513
        %v550 = vadd.f32 %v437, %v515
        %v551 = vadd.f32 %v438, %v518
        %v552 = vadd.f32 %v439, %v520
        %v553 = vadd.f32 %v440, %v523
        %v554 = vadd.f32 %v441, %v525
        %v555 = vadd.f32 %v442, %v528
        %v556 = vadd.f32 %v443, %v530
        %v557 = vadd.f32 %v444, %v533
        %v558 = vadd.f32 %v445, %v535
        %v559 = vadd.f32 %v446, %v538
        %v560 = vadd.f32 %v447, %v540
        %v561 = vadd.f32 %v448, %v543
        %v562 = vadd.f32 %v449, %v545
        %563 = vst [vmem:[%s341] sm:$0xff] %v547
        %564 = vst [vmem:[%s341 + $0x8] sm:$0xff] %v548
        %565 = vst [vmem:[%s341 + $0x10] sm:$0xff] %v549
        %566 = vst [vmem:[%s341 + $0x18] sm:$0xff] %v550
        %567 = vst [vmem:[%s341 + $0x20] sm:$0xff] %v551
        %568 = vst [vmem:[%s341 + $0x28] sm:$0xff] %v552
        %569 = vst [vmem:[%s341 + $0x30] sm:$0xff] %v553
        %570 = vst [vmem:[%s341 + $0x38] sm:$0xff] %v554
        %571 = vst [vmem:[%s341 + $0x40] sm:$0xff] %v555
        %572 = vst [vmem:[%s341 + $0x48] sm:$0xff] %v556
        %573 = vst [vmem:[%s341 + $0x50] sm:$0xff] %v557
        %574 = vst [vmem:[%s341 + $0x58] sm:$0xff] %v558
        %575 = vst [vmem:[%s341 + $0x60] sm:$0xff] %v559
        %576 = vst [vmem:[%s341 + $0x68] sm:$0xff] %v560
        %577 = vst [vmem:[%s341 + $0x70] sm:$0xff] %v561
        %578 = vst [vmem:[%s341 + $0x78] sm:$0xff] %v562
        %p579 = scmp.eq.s32.totalorder %s22, 1
        // Predicated region
        $region79: #{device_fwd.2} parent=69 // pred_check
          %p580 = pneg %p579
        $region80: #{device_fwd.2} parent=69 // pred_check_branch
          %582 = sbr.rel (%p580) target = $region82
        $region81: #{device_fwd.2} parent=69 // pred_region
          %v583 = vld [vmem:[%s329] sm:$0xff]
          %v584 = vld [vmem:[%s329 + $0x8] sm:$0xff]
          %v585 = vld [vmem:[%s329 + $0x10] sm:$0xff]
          %v586 = vld [vmem:[%s329 + $0x18] sm:$0xff]
          %v587 = vld [vmem:[%s329 + $0x20] sm:$0xff]
          %v588 = vld [vmem:[%s329 + $0x28] sm:$0xff]
          %v589 = vld [vmem:[%s329 + $0x30] sm:$0xff]
          %v590 = vld [vmem:[%s329 + $0x38] sm:$0xff]
          %v591 = vld [vmem:[%s329 + $0x40] sm:$0xff]
          %v592 = vld [vmem:[%s329 + $0x48] sm:$0xff]
          %v593 = vld [vmem:[%s329 + $0x50] sm:$0xff]
          %v594 = vld [vmem:[%s329 + $0x58] sm:$0xff]
          %v595 = vld [vmem:[%s329 + $0x60] sm:$0xff]
          %v596 = vld [vmem:[%s329 + $0x68] sm:$0xff]
          %v597 = vld [vmem:[%s329 + $0x70] sm:$0xff]
          %v598 = vld [vmem:[%s329 + $0x78] sm:$0xff]
          %v599 = vld [vmem:[%s341] sm:$0xff]
          %v600 = vld [vmem:[%s341 + $0x8] sm:$0xff]
          %v601 = vld [vmem:[%s341 + $0x10] sm:$0xff]
          %v602 = vld [vmem:[%s341 + $0x18] sm:$0xff]
          %v603 = vld [vmem:[%s341 + $0x20] sm:$0xff]
          %v604 = vld [vmem:[%s341 + $0x28] sm:$0xff]
          %v605 = vld [vmem:[%s341 + $0x30] sm:$0xff]
          %v606 = vld [vmem:[%s341 + $0x38] sm:$0xff]
          %v607 = vld [vmem:[%s341 + $0x40] sm:$0xff]
          %v608 = vld [vmem:[%s341 + $0x48] sm:$0xff]
          %v609 = vld [vmem:[%s341 + $0x50] sm:$0xff]
          %v610 = vld [vmem:[%s341 + $0x58] sm:$0xff]
          %v611 = vld [vmem:[%s341 + $0x60] sm:$0xff]
          %v612 = vld [vmem:[%s341 + $0x68] sm:$0xff]
          %v613 = vld [vmem:[%s341 + $0x70] sm:$0xff]
          %v614 = vld [vmem:[%s341 + $0x78] sm:$0xff]
          %v615 = vadd.f32 %v583, %v599
          %v616 = vadd.f32 %v584, %v600
          %v617 = vadd.f32 %v585, %v601
          %v618 = vadd.f32 %v586, %v602
          %v619 = vadd.f32 %v587, %v603
          %v620 = vadd.f32 %v588, %v604
          %v621 = vadd.f32 %v589, %v605
          %v622 = vadd.f32 %v590, %v606
          %v623 = vadd.f32 %v591, %v607
          %v624 = vadd.f32 %v592, %v608
          %v625 = vadd.f32 %v593, %v609
          %v626 = vadd.f32 %v594, %v610
          %v627 = vadd.f32 %v595, %v611
          %v628 = vadd.f32 %v596, %v612
          %v629 = vadd.f32 %v597, %v613
          %v630 = vadd.f32 %v598, %v614
          %v631 = vld [vmem:[%s335] sm:$0xff]
          %v632 = vld [vmem:[%s335 + $0x8] sm:$0xff]
          %v633 = vld [vmem:[%s335 + $0x10] sm:$0xff]
          %v634 = vld [vmem:[%s335 + $0x18] sm:$0xff]
          %v635 = vld [vmem:[%s335 + $0x20] sm:$0xff]
          %v636 = vld [vmem:[%s335 + $0x28] sm:$0xff]
          %v637 = vld [vmem:[%s335 + $0x30] sm:$0xff]
          %v638 = vld [vmem:[%s335 + $0x38] sm:$0xff]
          %v639 = vld [vmem:[%s335 + $0x40] sm:$0xff]
          %v640 = vld [vmem:[%s335 + $0x48] sm:$0xff]
          %v641 = vld [vmem:[%s335 + $0x50] sm:$0xff]
          %v642 = vld [vmem:[%s335 + $0x58] sm:$0xff]
          %v643 = vld [vmem:[%s335 + $0x60] sm:$0xff]
          %v644 = vld [vmem:[%s335 + $0x68] sm:$0xff]
          %v645 = vld [vmem:[%s335 + $0x70] sm:$0xff]
          %v646 = vld [vmem:[%s335 + $0x78] sm:$0xff]
          %648 = vset.pattern.permute.xlu0 0
          %649 = vperm.xlu0 %648, %v631
          %v650 = vpop.permute.xlu0 %649
          %653 = vset.pattern.permute.xlu0 0
          %654 = vperm.xlu0 %653, %v632
          %v655 = vpop.permute.xlu0 %654
          %658 = vset.pattern.permute.xlu0 0
          %659 = vperm.xlu0 %658, %v633
          %v660 = vpop.permute.xlu0 %659
          %663 = vset.pattern.permute.xlu0 0
          %664 = vperm.xlu0 %663, %v634
          %v665 = vpop.permute.xlu0 %664
          %668 = vset.pattern.permute.xlu0 0
          %669 = vperm.xlu0 %668, %v635
          %v670 = vpop.permute.xlu0 %669
          %673 = vset.pattern.permute.xlu0 0
          %674 = vperm.xlu0 %673, %v636
          %v675 = vpop.permute.xlu0 %674
          %678 = vset.pattern.permute.xlu0 0
          %679 = vperm.xlu0 %678, %v637
          %v680 = vpop.permute.xlu0 %679
          %683 = vset.pattern.permute.xlu0 0
          %684 = vperm.xlu0 %683, %v638
          %v685 = vpop.permute.xlu0 %684
          %688 = vset.pattern.permute.xlu0 0
          %689 = vperm.xlu0 %688, %v639
          %v690 = vpop.permute.xlu0 %689
          %693 = vset.pattern.permute.xlu0 0
          %694 = vperm.xlu0 %693, %v640
          %v695 = vpop.permute.xlu0 %694
          %698 = vset.pattern.permute.xlu0 0
          %699 = vperm.xlu0 %698, %v641
          %v700 = vpop.permute.xlu0 %699
          %703 = vset.pattern.permute.xlu0 0
          %704 = vperm.xlu0 %703, %v642
          %v705 = vpop.permute.xlu0 %704
          %708 = vset.pattern.permute.xlu0 0
          %709 = vperm.xlu0 %708, %v643
          %v710 = vpop.permute.xlu0 %709
          %713 = vset.pattern.permute.xlu0 0
          %714 = vperm.xlu0 %713, %v644
          %v715 = vpop.permute.xlu0 %714
          %718 = vset.pattern.permute.xlu0 0
          %719 = vperm.xlu0 %718, %v645
          %v720 = vpop.permute.xlu0 %719
          %723 = vset.pattern.permute.xlu0 0
          %724 = vperm.xlu0 %723, %v646
          %v725 = vpop.permute.xlu0 %724
          %v727 = vadd.f32 %v615, %v650
          %v728 = vadd.f32 %v616, %v655
          %v729 = vadd.f32 %v617, %v660
          %v730 = vadd.f32 %v618, %v665
          %v731 = vadd.f32 %v619, %v670
          %v732 = vadd.f32 %v620, %v675
          %v733 = vadd.f32 %v621, %v680
          %v734 = vadd.f32 %v622, %v685
          %v735 = vadd.f32 %v623, %v690
          %v736 = vadd.f32 %v624, %v695
          %v737 = vadd.f32 %v625, %v700
          %v738 = vadd.f32 %v626, %v705
          %v739 = vadd.f32 %v627, %v710
          %v740 = vadd.f32 %v628, %v715
          %v741 = vadd.f32 %v629, %v720
          %v742 = vadd.f32 %v630, %v725
          %743 = vst [vmem:[%s341] sm:$0xff] %v727
          %744 = vst [vmem:[%s341 + $0x8] sm:$0xff] %v728
          %745 = vst [vmem:[%s341 + $0x10] sm:$0xff] %v729
          %746 = vst [vmem:[%s341 + $0x18] sm:$0xff] %v730
          %747 = vst [vmem:[%s341 + $0x20] sm:$0xff] %v731
          %748 = vst [vmem:[%s341 + $0x28] sm:$0xff] %v732
          %749 = vst [vmem:[%s341 + $0x30] sm:$0xff] %v733
          %750 = vst [vmem:[%s341 + $0x38] sm:$0xff] %v734
          %751 = vst [vmem:[%s341 + $0x40] sm:$0xff] %v735
          %752 = vst [vmem:[%s341 + $0x48] sm:$0xff] %v736
          %753 = vst [vmem:[%s341 + $0x50] sm:$0xff] %v737
          %754 = vst [vmem:[%s341 + $0x58] sm:$0xff] %v738
          %755 = vst [vmem:[%s341 + $0x60] sm:$0xff] %v739
          %756 = vst [vmem:[%s341 + $0x68] sm:$0xff] %v740
          %757 = vst [vmem:[%s341 + $0x70] sm:$0xff] %v741
          %758 = vst [vmem:[%s341 + $0x78] sm:$0xff] %v742
          %v759 = vpack.c.bf16 %v727, %v727
          %v760 = vpack.c.bf16 %v728, %v728
          %v761 = vpack.c.bf16 %v729, %v729
          %v762 = vpack.c.bf16 %v730, %v730
          %v763 = vpack.c.bf16 %v731, %v731
          %v764 = vpack.c.bf16 %v732, %v732
          %v765 = vpack.c.bf16 %v733, %v733
          %v766 = vpack.c.bf16 %v734, %v734
          %v767 = vpack.c.bf16 %v735, %v735
          %v768 = vpack.c.bf16 %v736, %v736
          %v769 = vpack.c.bf16 %v737, %v737
          %v770 = vpack.c.bf16 %v738, %v738
          %v771 = vpack.c.bf16 %v739, %v739
          %v772 = vpack.c.bf16 %v740, %v740
          %v773 = vpack.c.bf16 %v741, %v741
          %v774 = vpack.c.bf16 %v742, %v742
          %775 = vst [vmem:[%s347] sm:$0xf] %v759
          %776 = vst [vmem:[%s347 + $0x4] sm:$0xf] %v760
          %777 = vst [vmem:[%s347 + $0x8] sm:$0xf] %v761
          %778 = vst [vmem:[%s347 + $0xc] sm:$0xf] %v762
          %779 = vst [vmem:[%s347 + $0x10] sm:$0xf] %v763
          %780 = vst [vmem:[%s347 + $0x14] sm:$0xf] %v764
          %781 = vst [vmem:[%s347 + $0x18] sm:$0xf] %v765
          %782 = vst [vmem:[%s347 + $0x1c] sm:$0xf] %v766
          %783 = vst [vmem:[%s347 + $0x20] sm:$0xf] %v767
          %784 = vst [vmem:[%s347 + $0x24] sm:$0xf] %v768
          %785 = vst [vmem:[%s347 + $0x28] sm:$0xf] %v769
          %786 = vst [vmem:[%s347 + $0x2c] sm:$0xf] %v770
          %787 = vst [vmem:[%s347 + $0x30] sm:$0xf] %v771
          %788 = vst [vmem:[%s347 + $0x34] sm:$0xf] %v772
          %789 = vst [vmem:[%s347 + $0x38] sm:$0xf] %v773
          %790 = vst [vmem:[%s347 + $0x3c] sm:$0xf] %v774
        $region82: #{device_fwd.2} parent=69 // pred_fallthru
          _
        %s791 = smul.u32 16, %s21
        %p792 = scmp.lt.s32.totalorder %s791, 15
        %s793 = scalar_select %p792, %s791, 15
        %s794 = smul.addr %s793, 8
        %s795 = scalar_lea.vmem %s4, %s794
        %s796 = smul.u32 16, %s21
        %p797 = scmp.lt.s32.totalorder %s796, 15
        %s798 = scalar_select %p797, %s796, 15
        %s799 = smul.addr %s798, 4
        %s800 = scalar_lea.vmem %s5, %s799
        // Predicated region
        $region83: #{device_fwd.2} parent=69 // pred_check
          %p801 = pneg %p148
        $region84: #{device_fwd.2} parent=69 // pred_check_branch
          %803 = sbr.rel (%p801) target = $region86
        $region85: #{device_fwd.2} parent=69 // pred_region
          %s804 = smul.u32 16, %s21
        $region86: #{device_fwd.2} parent=69 // pred_fallthru
          _
        // Predicated region
        $region87: #{device_fwd.2} parent=69 // pred_check
          %p805 = pneg %p174
        $region88: #{device_fwd.2} parent=69 // pred_check_branch
          %807 = sbr.rel (%p805) target = $region90
        $region89: #{device_fwd.2} parent=69 // pred_region
          %s808 = smul.u32 16, %s21
        $region90: #{device_fwd.2} parent=69 // pred_fallthru
          _
        // Predicated region
        $region91: #{device_fwd.2} parent=69 // pred_check
          %p809 = pneg %p148
        $region92: #{device_fwd.2} parent=69 // pred_check_branch
          %811 = sbr.rel (%p809) target = $region94
        $region93: #{device_fwd.2} parent=69 // pred_region
          %s812 = smul.u32 16, %s21
          %p813 = scmp.lt.s32.totalorder %s812, 15
          %s814 = scalar_select %p813, %s812, 15
          %s815 = smul.addr %s814, 8
          %s816 = scalar_lea.vmem %s4, %s815
        $region94: #{device_fwd.2} parent=69 // pred_fallthru
          _
        // Predicated region
        $region95: #{device_fwd.2} parent=69 // pred_check
          %p817 = pneg %p174
        $region96: #{device_fwd.2} parent=69 // pred_check_branch
          %819 = sbr.rel (%p817) target = $region98
        $region97: #{device_fwd.2} parent=69 // pred_region
          %s820 = smul.u32 16, %s21
          %p821 = scmp.lt.s32.totalorder %s820, 15
          %s822 = scalar_select %p821, %s820, 15
          %s823 = smul.addr %s822, 4
          %s824 = scalar_lea.vmem %s5, %s823
        $region98: #{device_fwd.2} parent=69 // pred_fallthru
          _
      $region70: #{device_fwd.2} parent=5 // pred_fallthru
        _
      %p825 = scmp.le.s32.totalorder 2, %s12
      // Predicated region
      $region99: #{device_fwd.2} parent=5 // pred_check
        %p826 = pneg %p825
      $region100: #{device_fwd.2} parent=5 // pred_check_branch
        %828 = sbr.rel (%p826) target = $region102
      $region101: #{device_fwd.2} parent=5 // pred_region
        %s829 = ssub.s32 %s12, 2
      $region102: #{device_fwd.2} parent=5 // pred_fallthru
        _
    $region6: #{device_fwd.2} parent=1 // loop_footer
      %s16 = sadd.s32 1, %s12
    $region7: #{device_fwd.2} parent=1 // loop_footer_branch
      %11 = sbr.rel target = $region3
    $region8: #{device_fwd.2} parent=1 // loop_exit
      _

</llo_original>
